<compile_context>
chip_gen: v5e
topology: v5e:2x2
jax: 0.10.0
libtpu: 0.0.40
codegen_flags: <defaults>
</compile_context>

<pallas_src>
import jax
import jax.numpy as jnp
from jax import lax
from jax.experimental import pallas as pl
from jax.experimental.pallas import tpu as pltpu

_PAD = 8           # f32 sublane group: node-count padding unit
_ONESHOT_MAX = 24  # one-shot aggregation when n_pad <= this; stream 8-row chunks above


# ----------------------------------------------------------------------------
# Fused Pallas kernel: per grid step g (= graph), run two shared-weight SAGE layers.
# ----------------------------------------------------------------------------
def fused_sage2_kernel(feat_ref, adj_t_ref, w_pool_ref, b_pool_ref,
                       w_self_ref, w_neigh_ref, bias_ref, out1_ref, out2_ref):
    n_pad, h = feat_ref.shape
    agg_chunk = n_pad if n_pad <= _ONESHOT_MAX else _PAD
    n_chunks = n_pad // agg_chunk

    adj_t = adj_t_ref[...]        # (N, N) f32, adj_t[src, dst]
    w_pool = w_pool_ref[...]      # (H, H) bf16
    w_self = w_self_ref[...]      # (H, H) bf16
    w_neigh = w_neigh_ref[...]    # (H, H) bf16
    b_pool = b_pool_ref[...]      # (1, H) f32
    bias = bias_ref[...]          # (1, H) f32

    def sage(x):                  # x: (N, H) f32
        xb = x.astype(jnp.bfloat16)
        # fc_pool + ReLU (bf16 MXU operands, f32 accumulation). feat_drop=0 -> identity.
        hp = jnp.maximum(
            jnp.dot(xb, w_pool, preferred_element_type=jnp.float32) + b_pool, 0.0)

        # Multiply-max aggregation: neigh[i, k] = max_j adj[i, j] * hp[j, k].
        # Exact vs. DGL's masked max because hp >= 0 (post-ReLU); isolated / padded
        # nodes have all-zero adjacency columns -> neigh = 0, matching DGL.
        # Static Python loop: n_chunks == 1 here (one-shot), and stays small even for
        # larger graphs; slices are static so no VMEM scratch round-trip is needed.
        neigh = jnp.zeros((n_pad, h), jnp.float32)
        for c in range(n_chunks):
            j0 = c * agg_chunk
            a_blk = adj_t[j0:j0 + agg_chunk, :]              # (chunk, N)  [src, dst]
            p_blk = hp[j0:j0 + agg_chunk, :]                 # (chunk, H)
            contrib = jnp.max(a_blk[:, :, None] * p_blk[:, None, :], axis=0)
            neigh = jnp.maximum(neigh, contrib)

        # rst = feat @ W_self + neigh @ W_neigh + bias  (two K=H MXU passes, f32 acc).
        rst = (jnp.dot(xb, w_self, preferred_element_type=jnp.float32)
               + jnp.dot(neigh.astype(jnp.bfloat16), w_neigh,
                         preferred_element_type=jnp.float32)
               + bias)
        return jnp.maximum(rst, 0.0)

    h1 = sage(feat_ref[...])
    out1_ref[...] = h1
    out2_ref[...] = sage(h1)


# ----------------------------------------------------------------------------
# Wrapper: pack statics ONCE, return a jitted forward(h_dr, h_p).
# ----------------------------------------------------------------------------
def _round_up(x, m):
    return (x + m - 1) // m * m


def _pack_statics(ddi_adj, ppi_adj, ddi_params, ppi_params, n_pad):
    def pad_adj_t(a):
        n = a.shape[0]
        # store transposed (src, dst); padded nodes are isolated (all-zero rows/cols)
        return jnp.pad(jnp.asarray(a, jnp.float32).T,
                       ((0, n_pad - n), (0, n_pad - n)))

    def stack(name, dt):
        return jnp.stack([jnp.asarray(ddi_params[name]),
                          jnp.asarray(ppi_params[name])]).astype(dt)

    # TODO(synk): for much larger graphs, ship the adjacency as int8 0/1 to quarter the
    # VMEM footprint / DMA bytes (noise at N<=24, so kept f32 here).
    return dict(
        adjs_t=jnp.stack([pad_adj_t(ddi_adj), pad_adj_t(ppi_adj)]),  # (2, N, N) f32
        w_pool=stack("w_pool", jnp.bfloat16),                        # (2, H, H)
        b_pool=stack("b_pool", jnp.float32),                         # (2, 1, H)
        w_self=stack("w_self", jnp.bfloat16),                        # (2, H, H)
        w_neigh=stack("w_neigh", jnp.bfloat16),                      # (2, H, H)
        bias=stack("bias", jnp.float32),                             # (2, 1, H)
    )


def make_all_graph_net(ddi_adj, ppi_adj, ddi_params, ppi_params):
    n_dr = ddi_adj.shape[0]
    n_p = ppi_adj.shape[0]
    H = ddi_params["w_pool"].shape[0]
    n_pad = _round_up(max(n_dr, n_p), _PAD)

    # Packed once, outside the per-call hot path.
    statics = _pack_statics(ddi_adj, ppi_adj, ddi_params, ppi_params, n_pad)

    def spec(shape):  # leading graph dim squeezed; one block per grid step
        return pl.BlockSpec((None,) + shape, lambda g: (g,) + (0,) * len(shape))

    flops = 4 * (6 * n_pad * H * H + 2 * n_pad * n_pad * H)
    bytes_accessed = int(sum(int(a.size) * a.dtype.itemsize for a in statics.values())
                         + 4 * 3 * 2 * n_pad * H)  # feats + two outputs (f32)

    call = pl.pallas_call(
        fused_sage2_kernel,
        out_shape=(jax.ShapeDtypeStruct((2, n_pad, H), jnp.float32),
                   jax.ShapeDtypeStruct((2, n_pad, H), jnp.float32)),
        grid=(2,),
        in_specs=[
            spec((n_pad, H)),        # features (f32)
            spec((n_pad, n_pad)),    # adjacency, transposed (src, dst), f32
            spec((H, H)),            # W_pool  (bf16)
            spec((1, H)),            # b_pool  (f32)
            spec((H, H)),            # W_self  (bf16)
            spec((H, H)),            # W_neigh (bf16)
            spec((1, H)),            # bias    (f32)
        ],
        out_specs=(spec((n_pad, H)), spec((n_pad, H))),
        # v7x: one graph per TensorCore (exposed weight DMA accepted per review);
        # v5e/v6e: single core, the two grid steps still pipeline prefetch vs compute.
        compiler_params=pltpu.CompilerParams(dimension_semantics=("parallel",)),
        cost_estimate=pl.CostEstimate(flops=flops, transcendentals=0,
                                      bytes_accessed=bytes_accessed),
    )

    @jax.jit
    def forward(h_dr, h_p):
        # Only per-call work traced here: pad+stack the two feature matrices,
        # run the fused kernel, strip padding.
        feats = jnp.stack([
            jnp.pad(h_dr.astype(jnp.float32), ((0, n_pad - n_dr), (0, 0))),
            jnp.pad(h_p.astype(jnp.float32), ((0, n_pad - n_p), (0, 0))),
        ])
        out1, out2 = call(feats, statics["adjs_t"], statics["w_pool"],
                          statics["b_pool"], statics["w_self"],
                          statics["w_neigh"], statics["bias"])
        # Original module order: (h_dr1, h_p1, h_dr2, h_p2)
        return out1[0, :n_dr], out1[1, :n_p], out2[0, :n_dr], out2[1, :n_p]

    return forward


# ----------------------------------------------------------------------------
# Deterministic parameter init (Xavier-uniform-like, shapes from DGL SAGEConv).
# ----------------------------------------------------------------------------
def init_sage_params(key, n_hidden):
    ks = jax.random.split(key, 4)
    lim = (6.0 / (2.0 * n_hidden)) ** 0.5
    u = lambda k: jax.random.uniform(k, (n_hidden, n_hidden), jnp.float32, -lim, lim)
    return {
        "w_pool": u(ks[0]),                                  # fc_pool.weight^T
        "b_pool": jnp.zeros((1, n_hidden), jnp.float32),     # fc_pool.bias
        "w_self": u(ks[1]),                                  # fc_self.weight^T (bias=False)
        "w_neigh": u(ks[2]),                                 # fc_neigh.weight^T (bias=False)
        "bias": jnp.zeros((1, n_hidden), jnp.float32),       # SAGEConv.bias
    }


def random_adjacency(key, n_nodes, p=0.25):
    a = (jax.random.uniform(key, (n_nodes, n_nodes)) < p).astype(jnp.float32)
    return a * (1.0 - jnp.eye(n_nodes, dtype=jnp.float32))   # no self loops


# ----------------------------------------------------------------------------
# Pure-JAX reference (DGL-style masked max) for a sanity check.
# ----------------------------------------------------------------------------
def _sage_ref(feat, adj, p):
    hi = lax.Precision.HIGHEST
    hp = jax.nn.relu(jnp.dot(feat, p["w_pool"], precision=hi) + p["b_pool"])
    masked = jnp.where(adj[:, :, None] > 0.5, hp[None, :, :], -jnp.inf)
    neigh = jnp.max(masked, axis=1)
    neigh = jnp.where(jnp.sum(adj, axis=1, keepdims=True) > 0.5, neigh, 0.0)
    rst = (jnp.dot(feat, p["w_self"], precision=hi)
           + jnp.dot(neigh, p["w_neigh"], precision=hi) + p["bias"])
    return jax.nn.relu(rst)


if __name__ == "__main__":
    n_hidden = 128     # SAGE hidden/feature width (lane-dense)
    n_drugs = 16       # DDI graph nodes
    n_prots = 24       # PPI graph nodes

    key = jax.random.PRNGKey(0)
    k_hdr, k_hp, k_ddi, k_ppi, k_pd, k_pp = jax.random.split(key, 6)

    h_dr = jax.random.normal(k_hdr, (n_drugs, n_hidden), jnp.float32)
    h_p = jax.random.normal(k_hp, (n_prots, n_hidden), jnp.float32)
    ddi_adj = random_adjacency(k_ddi, n_drugs)
    ppi_adj = random_adjacency(k_ppi, n_prots)

    ddi_params = init_sage_params(k_pd, n_hidden)
    ppi_params = init_sage_params(k_pp, n_hidden)

    forward = make_all_graph_net(ddi_adj, ppi_adj, ddi_params, ppi_params)
    h_dr1, h_p1, h_dr2, h_p2 = forward(h_dr, h_p)
    jax.block_until_ready((h_dr1, h_p1, h_dr2, h_p2))

    assert h_dr1.shape == (n_drugs, n_hidden) and h_dr2.shape == (n_drugs, n_hidden)
    assert h_p1.shape == (n_prots, n_hidden) and h_p2.shape == (n_prots, n_hidden)

    # Sanity check vs. the plain-JAX reference (tolerance covers bf16 MXU operands).
    r_dr1 = _sage_ref(h_dr, ddi_adj, ddi_params)
    r_dr2 = _sage_ref(r_dr1, ddi_adj, ddi_params)
    r_p1 = _sage_ref(h_p, ppi_adj, ppi_params)
    r_p2 = _sage_ref(r_p1, ppi_adj, ppi_params)
    for got, want in ((h_dr1, r_dr1), (h_dr2, r_dr2), (h_p1, r_p1), (h_p2, r_p2)):
        assert bool(jnp.allclose(got, want, rtol=5e-2, atol=5e-2)), "mismatch vs reference"

    # TODO(synk): feat_drop=0 so dropout is an exact identity; nonzero dropout would
    # need pltpu.prng_* inside the kernel.
    print("KERNEL_OK")
</pallas_src>

<mosaic_0001>
module attributes {stable_mosaic.version = 11 : i64} {
  func.func @fused_sage2_kernel(%arg0: i32, %arg1: memref<1x24x128xf32, #tpu.memory_space<vmem>>, %arg2: memref<1x24x24xf32, #tpu.memory_space<vmem>>, %arg3: memref<1x128x128xbf16, #tpu.memory_space<vmem>>, %arg4: memref<1x1x128xf32, #tpu.memory_space<vmem>>, %arg5: memref<1x128x128xbf16, #tpu.memory_space<vmem>>, %arg6: memref<1x128x128xbf16, #tpu.memory_space<vmem>>, %arg7: memref<1x1x128xf32, #tpu.memory_space<vmem>>, %arg8: memref<1x24x128xf32, #tpu.memory_space<vmem>>, %arg9: memref<1x24x128xf32, #tpu.memory_space<vmem>>) attributes {dimension_semantics = [#tpu.dimension_semantics<parallel>], iteration_bounds = array<i64: 2>, scalar_prefetch = 0 : i64, scratch_operands = 0 : i64, tpu.core_type = #tpu.core_type<tc>, window_params = [{transform_indices = @transform_0, window_bounds = array<i64: 1, 24, 128>}, {transform_indices = @transform_1, window_bounds = array<i64: 1, 24, 24>}, {transform_indices = @transform_2, window_bounds = array<i64: 1, 128, 128>}, {transform_indices = @transform_3, window_bounds = array<i64: 1, 1, 128>}, {transform_indices = @transform_4, window_bounds = array<i64: 1, 128, 128>}, {transform_indices = @transform_5, window_bounds = array<i64: 1, 128, 128>}, {transform_indices = @transform_6, window_bounds = array<i64: 1, 1, 128>}, {transform_indices = @transform_7, window_bounds = array<i64: 1, 24, 128>}, {transform_indices = @transform_8, window_bounds = array<i64: 1, 24, 128>}]} {
    %c0 = arith.constant 0 : index
    %c0_0 = arith.constant 0 : index
    %c0_1 = arith.constant 0 : index
    %0 = vector.load %arg2[%c0, %c0_0, %c0_1] : memref<1x24x24xf32, #tpu.memory_space<vmem>>, vector<1x24x24xf32>
    %1 = vector.shape_cast %0 : vector<1x24x24xf32> to vector<24x24xf32>
    %c0_2 = arith.constant 0 : index
    %c0_3 = arith.constant 0 : index
    %c0_4 = arith.constant 0 : index
    %2 = vector.load %arg3[%c0_2, %c0_3, %c0_4] : memref<1x128x128xbf16, #tpu.memory_space<vmem>>, vector<1x128x128xbf16>
    %3 = vector.shape_cast %2 : vector<1x128x128xbf16> to vector<128x128xbf16>
    %c0_5 = arith.constant 0 : index
    %c0_6 = arith.constant 0 : index
    %c0_7 = arith.constant 0 : index
    %4 = vector.load %arg5[%c0_5, %c0_6, %c0_7] : memref<1x128x128xbf16, #tpu.memory_space<vmem>>, vector<1x128x128xbf16>
    %5 = vector.shape_cast %4 : vector<1x128x128xbf16> to vector<128x128xbf16>
    %c0_8 = arith.constant 0 : index
    %c0_9 = arith.constant 0 : index
    %c0_10 = arith.constant 0 : index
    %6 = vector.load %arg6[%c0_8, %c0_9, %c0_10] : memref<1x128x128xbf16, #tpu.memory_space<vmem>>, vector<1x128x128xbf16>
    %7 = vector.shape_cast %6 : vector<1x128x128xbf16> to vector<128x128xbf16>
    %c0_11 = arith.constant 0 : index
    %c0_12 = arith.constant 0 : index
    %c0_13 = arith.constant 0 : index
    %8 = vector.load %arg4[%c0_11, %c0_12, %c0_13] : memref<1x1x128xf32, #tpu.memory_space<vmem>>, vector<1x1x128xf32>
    %9 = vector.shape_cast %8 : vector<1x1x128xf32> to vector<1x128xf32>
    %c0_14 = arith.constant 0 : index
    %c0_15 = arith.constant 0 : index
    %c0_16 = arith.constant 0 : index
    %10 = vector.load %arg7[%c0_14, %c0_15, %c0_16] : memref<1x1x128xf32, #tpu.memory_space<vmem>>, vector<1x1x128xf32>
    %11 = vector.shape_cast %10 : vector<1x1x128xf32> to vector<1x128xf32>
    %c0_17 = arith.constant 0 : index
    %c0_18 = arith.constant 0 : index
    %c0_19 = arith.constant 0 : index
    %12 = vector.load %arg1[%c0_17, %c0_18, %c0_19] : memref<1x24x128xf32, #tpu.memory_space<vmem>>, vector<1x24x128xf32>
    %13 = vector.shape_cast %12 : vector<1x24x128xf32> to vector<24x128xf32>
    %14 = arith.truncf %13 : vector<24x128xf32> to vector<24x128xbf16>
    %cst = arith.constant dense<0.000000e+00> : vector<24x128xf32>
    %15 = tpu.matmul %14, %3, %cst {dimension_numbers = #tpu.dot_dimension_numbers<[1], [0], [0], [1], [0, 0, 1, 1], [], []>} : vector<24x128xbf16>, vector<128x128xbf16>, vector<24x128xf32> -> vector<24x128xf32>
    %16 = vector.broadcast %9 : vector<1x128xf32> to vector<24x128xf32>
    %17 = arith.addf %15, %16 : vector<24x128xf32>
    %cst_20 = arith.constant 0.000000e+00 : f32
    %18 = vector.broadcast %cst_20 : f32 to vector<24x128xf32>
    %19 = arith.maximumf %17, %18 : vector<24x128xf32>
    %cst_21 = arith.constant 0.000000e+00 : f32
    %20 = vector.broadcast %cst_21 : f32 to vector<24x128xf32>
    %21 = vector.shape_cast %1 : vector<24x24xf32> to vector<24x24x1xf32>
    %22 = vector.shape_cast %19 : vector<24x128xf32> to vector<24x1x128xf32>
    %23 = vector.broadcast %21 : vector<24x24x1xf32> to vector<24x24x128xf32>
    %24 = vector.broadcast %22 : vector<24x1x128xf32> to vector<24x24x128xf32>
    %25 = arith.mulf %23, %24 : vector<24x24x128xf32>
    %cst_22 = arith.constant dense<0xFF800000> : vector<24x128xf32>
    %26 = vector.multi_reduction <maximumf>, %25, %cst_22 [0] : vector<24x24x128xf32> to vector<24x128xf32>
    %27 = arith.maximumf %20, %26 : vector<24x128xf32>
    %cst_23 = arith.constant dense<0.000000e+00> : vector<24x128xf32>
    %28 = tpu.matmul %14, %5, %cst_23 {dimension_numbers = #tpu.dot_dimension_numbers<[1], [0], [0], [1], [0, 0, 1, 1], [], []>} : vector<24x128xbf16>, vector<128x128xbf16>, vector<24x128xf32> -> vector<24x128xf32>
    %29 = arith.truncf %27 : vector<24x128xf32> to vector<24x128xbf16>
    %cst_24 = arith.constant dense<0.000000e+00> : vector<24x128xf32>
    %30 = tpu.matmul %29, %7, %cst_24 {dimension_numbers = #tpu.dot_dimension_numbers<[1], [0], [0], [1], [0, 0, 1, 1], [], []>} : vector<24x128xbf16>, vector<128x128xbf16>, vector<24x128xf32> -> vector<24x128xf32>
    %31 = arith.addf %28, %30 : vector<24x128xf32>
    %32 = vector.broadcast %11 : vector<1x128xf32> to vector<24x128xf32>
    %33 = arith.addf %31, %32 : vector<24x128xf32>
    %cst_25 = arith.constant 0.000000e+00 : f32
    %34 = vector.broadcast %cst_25 : f32 to vector<24x128xf32>
    %35 = arith.maximumf %33, %34 : vector<24x128xf32>
    %c0_26 = arith.constant 0 : index
    %c0_27 = arith.constant 0 : index
    %c0_28 = arith.constant 0 : index
    %36 = vector.load %arg8[%c0_26, %c0_27, %c0_28] : memref<1x24x128xf32, #tpu.memory_space<vmem>>, vector<1x24x128xf32>
    %37 = vector.shape_cast %36 : vector<1x24x128xf32> to vector<24x128xf32>
    %38 = vector.shape_cast %35 : vector<24x128xf32> to vector<1x24x128xf32>
    tpu.vector_store %arg8[%c0_26, %c0_27, %c0_28], %38 {strides = array<i32>} : memref<1x24x128xf32, #tpu.memory_space<vmem>>, vector<1x24x128xf32>,
    %39 = arith.truncf %35 : vector<24x128xf32> to vector<24x128xbf16>
    %cst_29 = arith.constant dense<0.000000e+00> : vector<24x128xf32>
    %40 = tpu.matmul %39, %3, %cst_29 {dimension_numbers = #tpu.dot_dimension_numbers<[1], [0], [0], [1], [0, 0, 1, 1], [], []>} : vector<24x128xbf16>, vector<128x128xbf16>, vector<24x128xf32> -> vector<24x128xf32>
    %41 = vector.broadcast %9 : vector<1x128xf32> to vector<24x128xf32>
    %42 = arith.addf %40, %41 : vector<24x128xf32>
    %cst_30 = arith.constant 0.000000e+00 : f32
    %43 = vector.broadcast %cst_30 : f32 to vector<24x128xf32>
    %44 = arith.maximumf %42, %43 : vector<24x128xf32>
    %cst_31 = arith.constant 0.000000e+00 : f32
    %45 = vector.broadcast %cst_31 : f32 to vector<24x128xf32>
    %46 = vector.shape_cast %1 : vector<24x24xf32> to vector<24x24x1xf32>
    %47 = vector.shape_cast %44 : vector<24x128xf32> to vector<24x1x128xf32>
    %48 = vector.broadcast %46 : vector<24x24x1xf32> to vector<24x24x128xf32>
    %49 = vector.broadcast %47 : vector<24x1x128xf32> to vector<24x24x128xf32>
    %50 = arith.mulf %48, %49 : vector<24x24x128xf32>
    %cst_32 = arith.constant dense<0xFF800000> : vector<24x128xf32>
    %51 = vector.multi_reduction <maximumf>, %50, %cst_32 [0] : vector<24x24x128xf32> to vector<24x128xf32>
    %52 = arith.maximumf %45, %51 : vector<24x128xf32>
    %cst_33 = arith.constant dense<0.000000e+00> : vector<24x128xf32>
    %53 = tpu.matmul %39, %5, %cst_33 {dimension_numbers = #tpu.dot_dimension_numbers<[1], [0], [0], [1], [0, 0, 1, 1], [], []>} : vector<24x128xbf16>, vector<128x128xbf16>, vector<24x128xf32> -> vector<24x128xf32>
    %54 = arith.truncf %52 : vector<24x128xf32> to vector<24x128xbf16>
    %cst_34 = arith.constant dense<0.000000e+00> : vector<24x128xf32>
    %55 = tpu.matmul %54, %7, %cst_34 {dimension_numbers = #tpu.dot_dimension_numbers<[1], [0], [0], [1], [0, 0, 1, 1], [], []>} : vector<24x128xbf16>, vector<128x128xbf16>, vector<24x128xf32> -> vector<24x128xf32>
    %56 = arith.addf %53, %55 : vector<24x128xf32>
    %57 = vector.broadcast %11 : vector<1x128xf32> to vector<24x128xf32>
    %58 = arith.addf %56, %57 : vector<24x128xf32>
    %cst_35 = arith.constant 0.000000e+00 : f32
    %59 = vector.broadcast %cst_35 : f32 to vector<24x128xf32>
    %60 = arith.maximumf %58, %59 : vector<24x128xf32>
    %c0_36 = arith.constant 0 : index
    %c0_37 = arith.constant 0 : index
    %c0_38 = arith.constant 0 : index
    %61 = vector.load %arg9[%c0_36, %c0_37, %c0_38] : memref<1x24x128xf32, #tpu.memory_space<vmem>>, vector<1x24x128xf32>
    %62 = vector.shape_cast %61 : vector<1x24x128xf32> to vector<24x128xf32>
    %63 = vector.shape_cast %60 : vector<24x128xf32> to vector<1x24x128xf32>
    tpu.vector_store %arg9[%c0_36, %c0_37, %c0_38], %63 {strides = array<i32>} : memref<1x24x128xf32, #tpu.memory_space<vmem>>, vector<1x24x128xf32>,
    return
  }
  func.func @transform_0(%arg0: i32) -> (i32, i32, i32) {
    %c0_i32 = arith.constant 0 : i32
    %c0_i32_0 = arith.constant 0 : i32
    %c0_i32_1 = arith.constant 0 : i32
    return %arg0, %c0_i32, %c0_i32_0 : i32, i32, i32
  }
  func.func @transform_1(%arg0: i32) -> (i32, i32, i32) {
    %c0_i32 = arith.constant 0 : i32
    %c0_i32_0 = arith.constant 0 : i32
    %c0_i32_1 = arith.constant 0 : i32
    return %arg0, %c0_i32, %c0_i32_0 : i32, i32, i32
  }
  func.func @transform_2(%arg0: i32) -> (i32, i32, i32) {
    %c0_i32 = arith.constant 0 : i32
    %c0_i32_0 = arith.constant 0 : i32
    %c0_i32_1 = arith.constant 0 : i32
    return %arg0, %c0_i32, %c0_i32_0 : i32, i32, i32
  }
  func.func @transform_3(%arg0: i32) -> (i32, i32, i32) {
    %c0_i32 = arith.constant 0 : i32
    %c0_i32_0 = arith.constant 0 : i32
    %c0_i32_1 = arith.constant 0 : i32
    return %arg0, %c0_i32, %c0_i32_0 : i32, i32, i32
  }
  func.func @transform_4(%arg0: i32) -> (i32, i32, i32) {
    %c0_i32 = arith.constant 0 : i32
    %c0_i32_0 = arith.constant 0 : i32
    %c0_i32_1 = arith.constant 0 : i32
    return %arg0, %c0_i32, %c0_i32_0 : i32, i32, i32
  }
  func.func @transform_5(%arg0: i32) -> (i32, i32, i32) {
    %c0_i32 = arith.constant 0 : i32
    %c0_i32_0 = arith.constant 0 : i32
    %c0_i32_1 = arith.constant 0 : i32
    return %arg0, %c0_i32, %c0_i32_0 : i32, i32, i32
  }
  func.func @transform_6(%arg0: i32) -> (i32, i32, i32) {
    %c0_i32 = arith.constant 0 : i32
    %c0_i32_0 = arith.constant 0 : i32
    %c0_i32_1 = arith.constant 0 : i32
    return %arg0, %c0_i32, %c0_i32_0 : i32, i32, i32
  }
  func.func @transform_7(%arg0: i32) -> (i32, i32, i32) {
    %c0_i32 = arith.constant 0 : i32
    %c0_i32_0 = arith.constant 0 : i32
    %c0_i32_1 = arith.constant 0 : i32
    return %arg0, %c0_i32, %c0_i32_0 : i32, i32, i32
  }
  func.func @transform_8(%arg0: i32) -> (i32, i32, i32) {
    %c0_i32 = arith.constant 0 : i32
    %c0_i32_0 = arith.constant 0 : i32
    %c0_i32_1 = arith.constant 0 : i32
    return %arg0, %c0_i32, %c0_i32_0 : i32, i32, i32
  }
}

</mosaic_0001>

<llo_original>
// kernel: forward.1
$region0: #{forward.1}
  #allocation0 [shape = 'u32[]', space=smem, size = 0x4, offset = 0x4, fixed_abs, tag = 'smem constant byte address 0x4 - core index']
  #allocation1 [shape = 'u32[72,128]{1,0:T(1,128)}', space=vmem, size = 0x9000, scoped, tag = 'internal scratch']
  %s0 = inlined_call_operand.vmem [shape: f32[2,24,128], index: 0, kind: input, shape index: {}]
  %s1 = inlined_call_operand.hbm [shape: f32[2,24,24], index: 1, kind: input, shape index: {}]
  %s2 = inlined_call_operand.hbm [shape: bf16[2,128,128], index: 2, kind: input, shape index: {}]
  %s3 = inlined_call_operand.vmem [shape: f32[2,1,128], index: 3, kind: input, shape index: {}, may-alias: {3,6}]
  %s4 = inlined_call_operand.hbm [shape: bf16[2,128,128], index: 4, kind: input, shape index: {}]
  %s5 = inlined_call_operand.vmem [shape: bf16[2,128,128], index: 5, kind: input, shape index: {}]
  %s6 = inlined_call_operand.vmem [shape: f32[2,1,128], index: 6, kind: input, shape index: {}, may-alias: {3,6}]
  %s7 = inlined_call_operand.vmem [shape: f32[2,24,128], index: 7, kind: output, shape index: {0}]
  %s8 = inlined_call_operand.vmem [shape: f32[2,24,128], index: 8, kind: output, shape index: {1}]
  %9 = xla_tuple %s7, %s8
  %s10 = sld [smem:[#allocation0]]
  $region81: #{forward.1} parent=0
    _
  %s12 = ssub.s32 1, %s10
  %s13 = scalar_select 0, %s12, %s10
  $region1: #{forward.1} parent=0
    #allocation2 [shape = 'u8[24576]{0}', space=vmem, size = 0x6000, scoped, tag = 'input window, operand 1']
    #allocation3 [shape = 's32[2]{0}', space=sflag, size = 0x8, scoped, tag = 'scoped memory for forward.1']
    #allocation4 [shape = 'u8[65536]{0}', space=vmem, size = 0x10000, scoped, tag = 'input window, operand 2']
    #allocation5 [shape = 's32[2]{0}', space=sflag, size = 0x8, scoped, tag = 'scoped memory for forward.1']
    #allocation6 [shape = 'u8[65536]{0}', space=vmem, size = 0x10000, scoped, tag = 'input window, operand 4']
    %14 = vsyncpa [#allocation3], 0
    %s15 = scalar_lea.sflag [#allocation3], 1
    %16 = vsyncpa %s15, 0
    %17 = vsyncpa [#allocation5], 0
    %s18 = scalar_lea.sflag [#allocation5], 1
    %19 = vsyncpa %s18, 0
    loop: start=0, step=1, limit=4
    $region2: #{forward.1} parent=1 // loop_pre_header
      _
    $region3: #{forward.1} parent=1 // loop_header
      %s21 = sphi 0, %s25
      %p22 = scmp.ge.s32.totalorder %s21, 4
      %s31 = sphi 0, %s33
      %s34 = sphi 0, %s31
      %s35 = sphi 0, %s34
      %s51 = sphi 0, %s35
      %s57 = sphi 0, %s59
      %s60 = sphi 0, %s57
      %s61 = sphi 0, %s60
      %s77 = sphi 0, %s61
      %s83 = sphi 0, %s85
      %s86 = sphi 0, %s83
      %s87 = sphi 0, %s86
      %s103 = sphi 0, %s87
      %s109 = sphi 0, %s111
      %s112 = sphi 0, %s109
      %s113 = sphi 0, %s112
      %s129 = sphi 0, %s113
      %s135 = sphi 0, %s137
      %s138 = sphi 0, %s135
      %s139 = sphi 0, %s138
      %s155 = sphi 0, %s139
      %s161 = sphi 0, %s163
      %s164 = sphi 0, %s161
      %s165 = sphi 0, %s164
      %s181 = sphi 0, %s165
      %s187 = sphi 0, %s189
      %s190 = sphi 0, %s187
      %s191 = sphi 0, %s190
      %s207 = sphi 0, %s191
      %s213 = sphi 0, %s215
      %s216 = sphi 0, %s213
      %s217 = sphi 0, %s216
      %s233 = sphi 0, %s217
      %s239 = sphi 0, %s241
      %s242 = sphi 0, %s239
      %s243 = sphi 0, %s242
      %s259 = sphi 0, %s243
    $region4: #{forward.1} parent=1 // loop_header_branch
      %24 = sbr.rel (%p22) target = $region8
    $region5: #{forward.1} parent=1 // loop_body
      %s26 = ssub.s32 %s21, 1
      %s27 = ssub.s32 %s21, 2
      %s28 = sadd.s32 %s21, 1
      %s29 = ssub.s32 %s21, %s28
      %p30 = scmp.eq.s32.totalorder %s29, 0
      %s32 = sadd.s32 %s31, 1
      %s33 = scalar_select %p30, %s31, %s32
      %p36 = pneg %p30
      %p37 = scmp.eq.s32.totalorder %s21, 1
      %p38 = por %p36, %p37
      %p39 = scmp.ne.s32.totalorder %s31, %s34
      %p40 = scmp.eq.s32.totalorder %s21, 0
      %p41 = por %p39, %p40
      %p42 = scmp.ne.s32.totalorder %s31, %s34
      %p43 = scmp.eq.s32.totalorder %s26, 1
      %p44 = por %p42, %p43
      %p45 = scmp.ne.s32.totalorder %s34, %s35
      %p46 = scmp.eq.s32.totalorder %s26, 0
      %p47 = por %p45, %p46
      %p48 = scmp.ne.s32.totalorder %s34, %s35
      %p49 = scmp.eq.s32.totalorder %s27, 1
      %p50 = por %p48, %p49
      %p52 = scmp.ne.s32.totalorder %s35, %s51
      %p53 = scmp.eq.s32.totalorder %s27, 0
      %p54 = por %p52, %p53
      %s55 = ssub.s32 %s21, %s28
      %p56 = scmp.eq.s32.totalorder %s55, 0
      %s58 = sadd.s32 %s57, 1
      %s59 = scalar_select %p56, %s57, %s58
      %p62 = pneg %p56
      %p63 = scmp.eq.s32.totalorder %s21, 1
      %p64 = por %p62, %p63
      %p65 = scmp.ne.s32.totalorder %s57, %s60
      %p66 = scmp.eq.s32.totalorder %s21, 0
      %p67 = por %p65, %p66
      %p68 = scmp.ne.s32.totalorder %s57, %s60
      %p69 = scmp.eq.s32.totalorder %s26, 1
      %p70 = por %p68, %p69
      %p71 = scmp.ne.s32.totalorder %s60, %s61
      %p72 = scmp.eq.s32.totalorder %s26, 0
      %p73 = por %p71, %p72
      %p74 = scmp.ne.s32.totalorder %s60, %s61
      %p75 = scmp.eq.s32.totalorder %s27, 1
      %p76 = por %p74, %p75
      %p78 = scmp.ne.s32.totalorder %s61, %s77
      %p79 = scmp.eq.s32.totalorder %s27, 0
      %p80 = por %p78, %p79
      %s81 = ssub.s32 %s21, %s28
      %p82 = scmp.eq.s32.totalorder %s81, 0
      %s84 = sadd.s32 %s83, 1
      %s85 = scalar_select %p82, %s83, %s84
      %p88 = pneg %p82
      %p89 = scmp.eq.s32.totalorder %s21, 1
      %p90 = por %p88, %p89
      %p91 = scmp.ne.s32.totalorder %s83, %s86
      %p92 = scmp.eq.s32.totalorder %s21, 0
      %p93 = por %p91, %p92
      %p94 = scmp.ne.s32.totalorder %s83, %s86
      %p95 = scmp.eq.s32.totalorder %s26, 1
      %p96 = por %p94, %p95
      %p97 = scmp.ne.s32.totalorder %s86, %s87
      %p98 = scmp.eq.s32.totalorder %s26, 0
      %p99 = por %p97, %p98
      %p100 = scmp.ne.s32.totalorder %s86, %s87
      %p101 = scmp.eq.s32.totalorder %s27, 1
      %p102 = por %p100, %p101
      %p104 = scmp.ne.s32.totalorder %s87, %s103
      %p105 = scmp.eq.s32.totalorder %s27, 0
      %p106 = por %p104, %p105
      %s107 = ssub.s32 %s21, %s28
      %p108 = scmp.eq.s32.totalorder %s107, 0
      %s110 = sadd.s32 %s109, 1
      %s111 = scalar_select %p108, %s109, %s110
      %p114 = pneg %p108
      %p115 = scmp.eq.s32.totalorder %s21, 1
      %p116 = por %p114, %p115
      %p117 = scmp.ne.s32.totalorder %s109, %s112
      %p118 = scmp.eq.s32.totalorder %s21, 0
      %p119 = por %p117, %p118
      %p120 = scmp.ne.s32.totalorder %s109, %s112
      %p121 = scmp.eq.s32.totalorder %s26, 1
      %p122 = por %p120, %p121
      %p123 = scmp.ne.s32.totalorder %s112, %s113
      %p124 = scmp.eq.s32.totalorder %s26, 0
      %p125 = por %p123, %p124
      %p126 = scmp.ne.s32.totalorder %s112, %s113
      %p127 = scmp.eq.s32.totalorder %s27, 1
      %p128 = por %p126, %p127
      %p130 = scmp.ne.s32.totalorder %s113, %s129
      %p131 = scmp.eq.s32.totalorder %s27, 0
      %p132 = por %p130, %p131
      %s133 = ssub.s32 %s21, %s28
      %p134 = scmp.eq.s32.totalorder %s133, 0
      %s136 = sadd.s32 %s135, 1
      %s137 = scalar_select %p134, %s135, %s136
      %p140 = pneg %p134
      %p141 = scmp.eq.s32.totalorder %s21, 1
      %p142 = por %p140, %p141
      %p143 = scmp.ne.s32.totalorder %s135, %s138
      %p144 = scmp.eq.s32.totalorder %s21, 0
      %p145 = por %p143, %p144
      %p146 = scmp.ne.s32.totalorder %s135, %s138
      %p147 = scmp.eq.s32.totalorder %s26, 1
      %p148 = por %p146, %p147
      %p149 = scmp.ne.s32.totalorder %s138, %s139
      %p150 = scmp.eq.s32.totalorder %s26, 0
      %p151 = por %p149, %p150
      %p152 = scmp.ne.s32.totalorder %s138, %s139
      %p153 = scmp.eq.s32.totalorder %s27, 1
      %p154 = por %p152, %p153
      %p156 = scmp.ne.s32.totalorder %s139, %s155
      %p157 = scmp.eq.s32.totalorder %s27, 0
      %p158 = por %p156, %p157
      %s159 = ssub.s32 %s21, %s28
      %p160 = scmp.eq.s32.totalorder %s159, 0
      %s162 = sadd.s32 %s161, 1
      %s163 = scalar_select %p160, %s161, %s162
      %p166 = pneg %p160
      %p167 = scmp.eq.s32.totalorder %s21, 1
      %p168 = por %p166, %p167
      %p169 = scmp.ne.s32.totalorder %s161, %s164
      %p170 = scmp.eq.s32.totalorder %s21, 0
      %p171 = por %p169, %p170
      %p172 = scmp.ne.s32.totalorder %s161, %s164
      %p173 = scmp.eq.s32.totalorder %s26, 1
      %p174 = por %p172, %p173
      %p175 = scmp.ne.s32.totalorder %s164, %s165
      %p176 = scmp.eq.s32.totalorder %s26, 0
      %p177 = por %p175, %p176
      %p178 = scmp.ne.s32.totalorder %s164, %s165
      %p179 = scmp.eq.s32.totalorder %s27, 1
      %p180 = por %p178, %p179
      %p182 = scmp.ne.s32.totalorder %s165, %s181
      %p183 = scmp.eq.s32.totalorder %s27, 0
      %p184 = por %p182, %p183
      %s185 = ssub.s32 %s21, %s28
      %p186 = scmp.eq.s32.totalorder %s185, 0
      %s188 = sadd.s32 %s187, 1
      %s189 = scalar_select %p186, %s187, %s188
      %p192 = pneg %p186
      %p193 = scmp.eq.s32.totalorder %s21, 1
      %p194 = por %p192, %p193
      %p195 = scmp.ne.s32.totalorder %s187, %s190
      %p196 = scmp.eq.s32.totalorder %s21, 0
      %p197 = por %p195, %p196
      %p198 = scmp.ne.s32.totalorder %s187, %s190
      %p199 = scmp.eq.s32.totalorder %s26, 1
      %p200 = por %p198, %p199
      %p201 = scmp.ne.s32.totalorder %s190, %s191
      %p202 = scmp.eq.s32.totalorder %s26, 0
      %p203 = por %p201, %p202
      %p204 = scmp.ne.s32.totalorder %s190, %s191
      %p205 = scmp.eq.s32.totalorder %s27, 1
      %p206 = por %p204, %p205
      %p208 = scmp.ne.s32.totalorder %s191, %s207
      %p209 = scmp.eq.s32.totalorder %s27, 0
      %p210 = por %p208, %p209
      %s211 = ssub.s32 %s21, %s28
      %p212 = scmp.eq.s32.totalorder %s211, 0
      %s214 = sadd.s32 %s213, 1
      %s215 = scalar_select %p212, %s213, %s214
      %p218 = pneg %p212
      %p219 = scmp.eq.s32.totalorder %s21, 1
      %p220 = por %p218, %p219
      %p221 = scmp.ne.s32.totalorder %s213, %s216
      %p222 = scmp.eq.s32.totalorder %s21, 0
      %p223 = por %p221, %p222
      %p224 = scmp.ne.s32.totalorder %s213, %s216
      %p225 = scmp.eq.s32.totalorder %s26, 1
      %p226 = por %p224, %p225
      %p227 = scmp.ne.s32.totalorder %s216, %s217
      %p228 = scmp.eq.s32.totalorder %s26, 0
      %p229 = por %p227, %p228
      %p230 = scmp.ne.s32.totalorder %s216, %s217
      %p231 = scmp.eq.s32.totalorder %s27, 1
      %p232 = por %p230, %p231
      %p234 = scmp.ne.s32.totalorder %s217, %s233
      %p235 = scmp.eq.s32.totalorder %s27, 0
      %p236 = por %p234, %p235
      %s237 = ssub.s32 %s21, %s28
      %p238 = scmp.eq.s32.totalorder %s237, 0
      %s240 = sadd.s32 %s239, 1
      %s241 = scalar_select %p238, %s239, %s240
      %p244 = pneg %p238
      %p245 = scmp.eq.s32.totalorder %s21, 1
      %p246 = por %p244, %p245
      %p247 = scmp.ne.s32.totalorder %s239, %s242
      %p248 = scmp.eq.s32.totalorder %s21, 0
      %p249 = por %p247, %p248
      %p250 = scmp.ne.s32.totalorder %s239, %s242
      %p251 = scmp.eq.s32.totalorder %s26, 1
      %p252 = por %p250, %p251
      %p253 = scmp.ne.s32.totalorder %s242, %s243
      %p254 = scmp.eq.s32.totalorder %s26, 0
      %p255 = por %p253, %p254
      %p256 = scmp.ne.s32.totalorder %s242, %s243
      %p257 = scmp.eq.s32.totalorder %s27, 1
      %p258 = por %p256, %p257
      %p260 = scmp.ne.s32.totalorder %s243, %s259
      %p261 = scmp.eq.s32.totalorder %s27, 0
      %p262 = por %p260, %p261
      %p263 = scmp.le.s32.totalorder 1, %s21
      %p264 = scmp.lt.s32.totalorder %s21, 3
      %p265 = pnand %p263, %p264
      %p266 = pneg %p265
      // Predicated region
      $region9: #{forward.1} parent=5 // pred_check
        _
      $region10: #{forward.1} parent=5 // pred_check_branch
        %268 = sbr.rel (%p265) target = $region12
      $region11: #{forward.1} parent=5 // pred_region
        %s269 = ssub.s32 %s21, 1
      $region12: #{forward.1} parent=5 // pred_fallthru
        _
      %p270 = scmp.lt.s32.totalorder %s21, 2
      // Predicated region
      $region13: #{forward.1} parent=5 // pred_check
        %p271 = pneg %p270
      $region14: #{forward.1} parent=5 // pred_check_branch
        %273 = sbr.rel (%p271) target = $region16
      $region15: #{forward.1} parent=5 // pred_region
        // Predicated region
        $region17: #{forward.1} parent=15 // pred_check
          %p274 = pneg %p41
        $region18: #{forward.1} parent=15 // pred_check_branch
          %276 = sbr.rel (%p274) target = $region20
        $region19: #{forward.1} parent=15 // pred_region
          %p277 = scmp.lt.s32.totalorder %s21, 1
          %s278 = scalar_select %p277, %s21, 1
          %s279 = smul.addr %s278, 3
          %s280 = smul.addr %s279, 8
          %s281 = scalar_lea.vmem %s0, %s280
        $region20: #{forward.1} parent=15 // pred_fallthru
          _
        // Predicated region
        $region21: #{forward.1} parent=15 // pred_check
          %p282 = pneg %p67
        $region22: #{forward.1} parent=15 // pred_check_branch
          %284 = sbr.rel (%p282) target = $region24
        $region23: #{forward.1} parent=15 // pred_region
          %s285 = sand.u32 %s57, 1
          %s286 = scalar_lea.sflag [#allocation3], %s285
          %s287 = sand.u32 %s57, 1
          %s288 = smul.addr %s287, 24
          %s289 = scalar_lea.vmem [#allocation2], %s288
          %291 = vsyncadd %s286, 0
          %s292 = smul.addr %s21, 3
          %s293 = smul.addr %s292, 8
          %s294 = scalar_lea.hbm %s1, %s293
          %s295 = sshll.u32 %s294, 4
          %s296 = int_to_ptr.hbm [resolvable:$true] %s295
          %s297 = sshll.u32 %s289, 4
          %s298 = int_to_ptr.vmem [resolvable:$true] %s297
          %303 = dma.hbm_to_vmem [thread:$0]  %s296, 384, %s298, %s286, 128, 128, 8
        $region24: #{forward.1} parent=15 // pred_fallthru
          _
        // Predicated region
        $region25: #{forward.1} parent=15 // pred_check
          %p304 = pneg %p93
        $region26: #{forward.1} parent=15 // pred_check_branch
          %306 = sbr.rel (%p304) target = $region28
        $region27: #{forward.1} parent=15 // pred_region
          %s307 = sand.u32 %s21, 1
          %s308 = scalar_lea.sflag [#allocation5], %s307
          %s309 = sand.u32 %s83, 1
          %s310 = smul.addr %s309, 64
          %s311 = scalar_lea.vmem [#allocation4], %s310
          %313 = vsyncadd %s308, 0
          %s314 = smul.addr %s21, 16
          %s315 = smul.addr %s314, 4
          %s316 = scalar_lea.hbm %s2, %s315
          %s317 = sshll.u32 %s316, 4
          %s318 = int_to_ptr.hbm [resolvable:$true] %s317
          %s319 = sshll.u32 %s311, 4
          %s320 = int_to_ptr.vmem [resolvable:$true] %s319
          %325 = dma.hbm_to_vmem [thread:$0]  %s318, 1024, %s320, %s308, 64, 64, 4
        $region28: #{forward.1} parent=15 // pred_fallthru
          _
        // Predicated region
        $region29: #{forward.1} parent=15 // pred_check
          %p326 = pneg %p119
        $region30: #{forward.1} parent=15 // pred_check_branch
          %328 = sbr.rel (%p326) target = $region32
        $region31: #{forward.1} parent=15 // pred_region
          %p329 = scmp.lt.s32.totalorder %s21, 1
          %s330 = scalar_select %p329, %s21, 1
          %s331 = scalar_lea.vmem %s3, %s330
        $region32: #{forward.1} parent=15 // pred_fallthru
          _
        // Predicated region
        $region33: #{forward.1} parent=15 // pred_check
          %p332 = pneg %p145
        $region34: #{forward.1} parent=15 // pred_check_branch
          %334 = sbr.rel (%p332) target = $region36
        $region35: #{forward.1} parent=15 // pred_region
          %s335 = sand.u32 %s21, 1
          %s336 = scalar_lea.sflag [#allocation5], %s335
          %s337 = sand.u32 %s135, 1
          %s338 = smul.addr %s337, 64
          %s339 = scalar_lea.vmem [#allocation6], %s338
          %341 = vsyncadd %s336, 0
          %s342 = smul.addr %s21, 16
          %s343 = smul.addr %s342, 4
          %s344 = scalar_lea.hbm %s4, %s343
          %s345 = sshll.u32 %s344, 4
          %s346 = int_to_ptr.hbm [resolvable:$true] %s345
          %s347 = sshll.u32 %s339, 4
          %s348 = int_to_ptr.vmem [resolvable:$true] %s347
          %353 = dma.hbm_to_vmem [thread:$0]  %s346, 1024, %s348, %s336, 64, 64, 4
        $region36: #{forward.1} parent=15 // pred_fallthru
          _
        // Predicated region
        $region37: #{forward.1} parent=15 // pred_check
          %p354 = pneg %p171
        $region38: #{forward.1} parent=15 // pred_check_branch
          %356 = sbr.rel (%p354) target = $region40
        $region39: #{forward.1} parent=15 // pred_region
          %p357 = scmp.lt.s32.totalorder %s21, 1
          %s358 = scalar_select %p357, %s21, 1
          %s359 = smul.addr %s358, 16
          %s360 = smul.addr %s359, 4
          %s361 = scalar_lea.vmem %s5, %s360
        $region40: #{forward.1} parent=15 // pred_fallthru
          _
        // Predicated region
        $region41: #{forward.1} parent=15 // pred_check
          %p362 = pneg %p197
        $region42: #{forward.1} parent=15 // pred_check_branch
          %364 = sbr.rel (%p362) target = $region44
        $region43: #{forward.1} parent=15 // pred_region
          %p365 = scmp.lt.s32.totalorder %s21, 1
          %s366 = scalar_select %p365, %s21, 1
          %s367 = scalar_lea.vmem %s6, %s366
        $region44: #{forward.1} parent=15 // pred_fallthru
          _
      $region16: #{forward.1} parent=5 // pred_fallthru
        _
      %p368 = scmp.le.s32.totalorder 1, %s21
      %p369 = scmp.lt.s32.totalorder %s21, 3
      %p370 = pnand %p368, %p369
      %p371 = pneg %p370
      // Predicated region
      $region45: #{forward.1} parent=5 // pred_check
        _
      $region46: #{forward.1} parent=5 // pred_check_branch
        %373 = sbr.rel (%p370) target = $region48
      $region47: #{forward.1} parent=5 // pred_region
        %s374 = ssub.s32 %s21, 1
        %s375 = sand.u32 %s60, 1
        %s376 = scalar_lea.sflag [#allocation3], %s375
        %s377 = sand.u32 %s60, 1
        %s378 = smul.addr %s377, 24
        %s379 = scalar_lea.vmem [#allocation2], %s378
        // Predicated region
        $region49: #{forward.1} parent=47 // pred_check
          %p380 = pneg %p73
        $region50: #{forward.1} parent=47 // pred_check_branch
          %382 = sbr.rel (%p380) target = $region52
        $region51: #{forward.1} parent=47 // pred_region
          %384 = dma.done %s376, 384
        $region52: #{forward.1} parent=47 // pred_fallthru
          _
        %s385 = sand.u32 %s26, 1
        %s386 = scalar_lea.sflag [#allocation5], %s385
        %s387 = sand.u32 %s86, 1
        %s388 = smul.addr %s387, 64
        %s389 = scalar_lea.vmem [#allocation4], %s388
        // Predicated region
        $region53: #{forward.1} parent=47 // pred_check
          %p390 = pneg %p99
        $region54: #{forward.1} parent=47 // pred_check_branch
          %392 = sbr.rel (%p390) target = $region56
        $region55: #{forward.1} parent=47 // pred_region
          %394 = dma.done %s386, 1024
        $region56: #{forward.1} parent=47 // pred_fallthru
          _
        %s395 = sand.u32 %s26, 1
        %s396 = scalar_lea.sflag [#allocation5], %s395
        %s397 = sand.u32 %s138, 1
        %s398 = smul.addr %s397, 64
        %s399 = scalar_lea.vmem [#allocation6], %s398
        // Predicated region
        $region57: #{forward.1} parent=47 // pred_check
          %p400 = pneg %p151
        $region58: #{forward.1} parent=47 // pred_check_branch
          %402 = sbr.rel (%p400) target = $region60
        $region59: #{forward.1} parent=47 // pred_region
          %404 = dma.done %s396, 1024
        $region60: #{forward.1} parent=47 // pred_fallthru
          _
        %p405 = scmp.lt.s32.totalorder %s26, 1
        %s406 = scalar_select %p405, %s26, 1
        %s407 = smul.addr %s406, 3
        %s408 = smul.addr %s407, 8
        %s409 = scalar_lea.vmem %s0, %s408
        %p410 = pneg %p47
        %p411 = pneg %p44
        %s412 = sand.u32 %s60, 1
        %s413 = scalar_lea.sflag [#allocation3], %s412
        %s414 = sand.u32 %s60, 1
        %s415 = smul.addr %s414, 24
        %s416 = scalar_lea.vmem [#allocation2], %s415
        %p417 = pneg %p73
        %p418 = pneg %p70
        %s419 = sand.u32 %s26, 1
        %s420 = scalar_lea.sflag [#allocation5], %s419
        %s421 = sand.u32 %s86, 1
        %s422 = smul.addr %s421, 64
        %s423 = scalar_lea.vmem [#allocation4], %s422
        %p424 = pneg %p99
        %p425 = pneg %p96
        %p426 = scmp.lt.s32.totalorder %s26, 1
        %s427 = scalar_select %p426, %s26, 1
        %s428 = scalar_lea.vmem %s3, %s427
        %p429 = pneg %p125
        %p430 = pneg %p122
        %s431 = sand.u32 %s26, 1
        %s432 = scalar_lea.sflag [#allocation5], %s431
        %s433 = sand.u32 %s138, 1
        %s434 = smul.addr %s433, 64
        %s435 = scalar_lea.vmem [#allocation6], %s434
        %p436 = pneg %p151
        %p437 = pneg %p148
        %p438 = scmp.lt.s32.totalorder %s26, 1
        %s439 = scalar_select %p438, %s26, 1
        %s440 = smul.addr %s439, 16
        %s441 = smul.addr %s440, 4
        %s442 = scalar_lea.vmem %s5, %s441
        %p443 = pneg %p177
        %p444 = pneg %p174
        %p445 = scmp.lt.s32.totalorder %s26, 1
        %s446 = scalar_select %p445, %s26, 1
        %s447 = scalar_lea.vmem %s6, %s446
        %p448 = pneg %p203
        %p449 = pneg %p200
        %p450 = pneg %p229
        %p451 = pneg %p226
        %p452 = scmp.lt.s32.totalorder %s26, 1
        %s453 = scalar_select %p452, %s26, 1
        %s454 = smul.addr %s453, 3
        %s455 = smul.addr %s454, 8
        %s456 = scalar_lea.vmem %s7, %s455
        %p457 = pneg %p255
        %p458 = pneg %p252
        %p459 = scmp.lt.s32.totalorder %s26, 1
        %s460 = scalar_select %p459, %s26, 1
        %s461 = smul.addr %s460, 3
        %s462 = smul.addr %s461, 8
        %s463 = scalar_lea.vmem %s8, %s462
        %p464 = scmp.lt.s32.totalorder %s26, 1
        %s465 = scalar_select %p464, %s26, 1
        %s466 = smul.addr %s465, 3
        %s467 = smul.addr %s466, 8
        %s468 = scalar_lea.vmem %s0, %s467
        %p469 = scmp.lt.s32.totalorder %s26, 1
        %s470 = scalar_select %p469, %s26, 1
        %s471 = scalar_lea.vmem %s3, %s470
        %p472 = scmp.lt.s32.totalorder %s26, 1
        %s473 = scalar_select %p472, %s26, 1
        %s474 = smul.addr %s473, 16
        %s475 = smul.addr %s474, 4
        %s476 = scalar_lea.vmem %s5, %s475
        %p477 = scmp.lt.s32.totalorder %s26, 1
        %s478 = scalar_select %p477, %s26, 1
        %s479 = scalar_lea.vmem %s6, %s478
        %p480 = scmp.lt.s32.totalorder %s26, 1
        %s481 = scalar_select %p480, %s26, 1
        %s482 = smul.addr %s481, 3
        %s483 = smul.addr %s482, 8
        %s484 = scalar_lea.vmem %s7, %s483
        %p485 = scmp.lt.s32.totalorder %s26, 1
        %s486 = scalar_select %p485, %s26, 1
        %s487 = smul.addr %s486, 3
        %s488 = smul.addr %s487, 8
        %s489 = scalar_lea.vmem %s8, %s488
        %v490 = vld [vmem:[%s379] sm:$0xff]
        %v491 = vld [vmem:[%s379 + $0x8] sm:$0xff]
        %v492 = vld [vmem:[%s379 + $0x10] sm:$0xff]
        %v493 = vld [vmem:[%s389] sm:$0xf]
        %v494 = vld [vmem:[%s389 + $0x4] sm:$0xf]
        %v495 = vld [vmem:[%s389 + $0x8] sm:$0xf]
        %v496 = vld [vmem:[%s389 + $0xc] sm:$0xf]
        %v497 = vld [vmem:[%s389 + $0x10] sm:$0xf]
        %v498 = vld [vmem:[%s389 + $0x14] sm:$0xf]
        %v499 = vld [vmem:[%s389 + $0x18] sm:$0xf]
        %v500 = vld [vmem:[%s389 + $0x1c] sm:$0xf]
        %v501 = vld [vmem:[%s389 + $0x20] sm:$0xf]
        %v502 = vld [vmem:[%s389 + $0x24] sm:$0xf]
        %v503 = vld [vmem:[%s389 + $0x28] sm:$0xf]
        %v504 = vld [vmem:[%s389 + $0x2c] sm:$0xf]
        %v505 = vld [vmem:[%s389 + $0x30] sm:$0xf]
        %v506 = vld [vmem:[%s389 + $0x34] sm:$0xf]
        %v507 = vld [vmem:[%s389 + $0x38] sm:$0xf]
        %v508 = vld [vmem:[%s389 + $0x3c] sm:$0xf]
        %v509 = vld [vmem:[%s399] sm:$0xf]
        %v510 = vld [vmem:[%s399 + $0x4] sm:$0xf]
        %v511 = vld [vmem:[%s399 + $0x8] sm:$0xf]
        %v512 = vld [vmem:[%s399 + $0xc] sm:$0xf]
        %v513 = vld [vmem:[%s399 + $0x10] sm:$0xf]
        %v514 = vld [vmem:[%s399 + $0x14] sm:$0xf]
        %v515 = vld [vmem:[%s399 + $0x18] sm:$0xf]
        %v516 = vld [vmem:[%s399 + $0x1c] sm:$0xf]
        %v517 = vld [vmem:[%s399 + $0x20] sm:$0xf]
        %v518 = vld [vmem:[%s399 + $0x24] sm:$0xf]
        %v519 = vld [vmem:[%s399 + $0x28] sm:$0xf]
        %v520 = vld [vmem:[%s399 + $0x2c] sm:$0xf]
        %v521 = vld [vmem:[%s399 + $0x30] sm:$0xf]
        %v522 = vld [vmem:[%s399 + $0x34] sm:$0xf]
        %v523 = vld [vmem:[%s399 + $0x38] sm:$0xf]
        %v524 = vld [vmem:[%s399 + $0x3c] sm:$0xf]
        %v525 = vld [vmem:[%s476] sm:$0xf]
        %v526 = vld [vmem:[%s476 + $0x4] sm:$0xf]
        %v527 = vld [vmem:[%s476 + $0x8] sm:$0xf]
        %v528 = vld [vmem:[%s476 + $0xc] sm:$0xf]
        %v529 = vld [vmem:[%s476 + $0x10] sm:$0xf]
        %v530 = vld [vmem:[%s476 + $0x14] sm:$0xf]
        %v531 = vld [vmem:[%s476 + $0x18] sm:$0xf]
        %v532 = vld [vmem:[%s476 + $0x1c] sm:$0xf]
        %v533 = vld [vmem:[%s476 + $0x20] sm:$0xf]
        %v534 = vld [vmem:[%s476 + $0x24] sm:$0xf]
        %v535 = vld [vmem:[%s476 + $0x28] sm:$0xf]
        %v536 = vld [vmem:[%s476 + $0x2c] sm:$0xf]
        %v537 = vld [vmem:[%s476 + $0x30] sm:$0xf]
        %v538 = vld [vmem:[%s476 + $0x34] sm:$0xf]
        %v539 = vld [vmem:[%s476 + $0x38] sm:$0xf]
        %v540 = vld [vmem:[%s476 + $0x3c] sm:$0xf]
        %v541 = vld [vmem:[%s471] sm:$0x1]
        %v542 = vld [vmem:[%s479] sm:$0x1]
        %v543 = vld [vmem:[%s468] sm:$0xff]
        %v544 = vld [vmem:[%s468 + $0x8] sm:$0xff]
        %v545 = vld [vmem:[%s468 + $0x10] sm:$0xff]
        %v546 = vpack.c.bf16 %v544, %v543
        %v547 = vpack.c.bf16 %v545, %v545
        %v549 = vperm.slane %v541, 0
        %v567 = vunpack.c.l.b16 %v493
        %v568 = vunpack.c.l.b16 %v494
        %v569 = vunpack.c.l.b16 %v495
        %v570 = vunpack.c.l.b16 %v496
        %v571 = vunpack.c.l.b16 %v497
        %v572 = vunpack.c.l.b16 %v498
        %v573 = vunpack.c.l.b16 %v499
        %v574 = vunpack.c.l.b16 %v500
        %v575 = vunpack.c.l.b16 %v501
        %v576 = vunpack.c.l.b16 %v502
        %v577 = vunpack.c.l.b16 %v503
        %v578 = vunpack.c.l.b16 %v504
        %v579 = vunpack.c.l.b16 %v505
        %v580 = vunpack.c.l.b16 %v506
        %v581 = vunpack.c.l.b16 %v507
        %v582 = vunpack.c.l.b16 %v508
        %v583 = vpack.c.b16 %v568, %v567
        %v584 = vpack.c.b16 %v570, %v569
        %v585 = vpack.c.b16 %v572, %v571
        %v586 = vpack.c.b16 %v574, %v573
        %v587 = vpack.c.b16 %v576, %v575
        %v588 = vpack.c.b16 %v578, %v577
        %v589 = vpack.c.b16 %v580, %v579
        %v590 = vpack.c.b16 %v582, %v581
        %599 = vmatpush.bf16.msra.mxu0 %v590
        %600 = vmatpush.bf16.msra.mxu0 %v589
        %601 = vmatpush.bf16.msra.mxu0 %v588
        %602 = vmatpush.bf16.msra.mxu0 %v587
        %603 = vmatpush.bf16.msra.mxu0 %v586
        %604 = vmatpush.bf16.msra.mxu0 %v585
        %605 = vmatpush.bf16.msra.mxu0 %v584
        %606 = vmatpush.bf16.msra.mxu0 %v583
        %607 = vmatmul.bf16.gmra.mxu0 %v546
        %v608 = vpop.f32.mrf.mxu0
        %v609 = vadd.f32 %v549, %v608
        %v610 = vpop.f32.mrf.mxu0
        %v611 = vadd.f32 %v549, %v610
        %612 = vmatmul.bf16.gmra.mxu0 %v547
        %v613 = vpop.f32.mrf.mxu0
        %v614 = vadd.f32 %v549, %v613
        %v615 = vpop.f32.mrf.mxu0
        %616 = vdwg.mxu0
        %v617 = vmax.f32 %v609, 0.0
        %v618 = vmax.f32 %v611, 0.0
        %v619 = vmax.f32 %v614, 0.0
        %v620 = vperm.slane %v490, 0
        %v621 = vlaneseq
        %v622 = vshrl.u32 %v621, 7
        %624 = vset.pattern.permute.xlu0 %v622
        %625 = vperm.xlu0 %624, %v620
        %v626 = vpop.permute.xlu0 %625
        %v627 = vlaneseq
        %v628 = vshrl.u32 %v627, 7
        %v629 = vadd.s32 %v628, 8
        %630 = vset.pattern.permute.xlu0 %v629
        %631 = vperm.xlu0 %630, %v620
        %v632 = vpop.permute.xlu0 %631
        %v633 = vlaneseq
        %v634 = vshrl.u32 %v633, 7
        %v635 = vadd.s32 %v634, 16
        %636 = vset.pattern.permute.xlu0 %v635
        %637 = vperm.xlu0 %636, %v620
        %v638 = vpop.permute.xlu0 %637
        %v639 = vperm.slane %v490, 1
        %v640 = vlaneseq
        %v641 = vshrl.u32 %v640, 7
        %643 = vset.pattern.permute.xlu0 %v641
        %644 = vperm.xlu0 %643, %v639
        %v645 = vpop.permute.xlu0 %644
        %v646 = vlaneseq
        %v647 = vshrl.u32 %v646, 7
        %v648 = vadd.s32 %v647, 8
        %649 = vset.pattern.permute.xlu0 %v648
        %650 = vperm.xlu0 %649, %v639
        %v651 = vpop.permute.xlu0 %650
        %v652 = vlaneseq
        %v653 = vshrl.u32 %v652, 7
        %v654 = vadd.s32 %v653, 16
        %655 = vset.pattern.permute.xlu0 %v654
        %656 = vperm.xlu0 %655, %v639
        %v657 = vpop.permute.xlu0 %656
        %v658 = vperm.slane %v490, 2
        %v659 = vlaneseq
        %v660 = vshrl.u32 %v659, 7
        %662 = vset.pattern.permute.xlu0 %v660
        %663 = vperm.xlu0 %662, %v658
        %v664 = vpop.permute.xlu0 %663
        %v665 = vlaneseq
        %v666 = vshrl.u32 %v665, 7
        %v667 = vadd.s32 %v666, 8
        %668 = vset.pattern.permute.xlu0 %v667
        %669 = vperm.xlu0 %668, %v658
        %v670 = vpop.permute.xlu0 %669
        %v671 = vlaneseq
        %v672 = vshrl.u32 %v671, 7
        %v673 = vadd.s32 %v672, 16
        %674 = vset.pattern.permute.xlu0 %v673
        %675 = vperm.xlu0 %674, %v658
        %v676 = vpop.permute.xlu0 %675
        %v677 = vperm.slane %v490, 3
        %v678 = vlaneseq
        %v679 = vshrl.u32 %v678, 7
        %681 = vset.pattern.permute.xlu0 %v679
        %682 = vperm.xlu0 %681, %v677
        %v683 = vpop.permute.xlu0 %682
        %v684 = vlaneseq
        %v685 = vshrl.u32 %v684, 7
        %v686 = vadd.s32 %v685, 8
        %687 = vset.pattern.permute.xlu0 %v686
        %688 = vperm.xlu0 %687, %v677
        %v689 = vpop.permute.xlu0 %688
        %v690 = vlaneseq
        %v691 = vshrl.u32 %v690, 7
        %v692 = vadd.s32 %v691, 16
        %693 = vset.pattern.permute.xlu0 %v692
        %694 = vperm.xlu0 %693, %v677
        %v695 = vpop.permute.xlu0 %694
        %v696 = vperm.slane %v490, 4
        %v697 = vlaneseq
        %v698 = vshrl.u32 %v697, 7
        %700 = vset.pattern.permute.xlu0 %v698
        %701 = vperm.xlu0 %700, %v696
        %v702 = vpop.permute.xlu0 %701
        %v703 = vlaneseq
        %v704 = vshrl.u32 %v703, 7
        %v705 = vadd.s32 %v704, 8
        %706 = vset.pattern.permute.xlu0 %v705
        %707 = vperm.xlu0 %706, %v696
        %v708 = vpop.permute.xlu0 %707
        %v709 = vlaneseq
        %v710 = vshrl.u32 %v709, 7
        %v711 = vadd.s32 %v710, 16
        %712 = vset.pattern.permute.xlu0 %v711
        %713 = vperm.xlu0 %712, %v696
        %v714 = vpop.permute.xlu0 %713
        %v715 = vperm.slane %v490, 5
        %v716 = vlaneseq
        %v717 = vshrl.u32 %v716, 7
        %719 = vset.pattern.permute.xlu0 %v717
        %720 = vperm.xlu0 %719, %v715
        %v721 = vpop.permute.xlu0 %720
        %v722 = vlaneseq
        %v723 = vshrl.u32 %v722, 7
        %v724 = vadd.s32 %v723, 8
        %725 = vset.pattern.permute.xlu0 %v724
        %726 = vperm.xlu0 %725, %v715
        %v727 = vpop.permute.xlu0 %726
        %v728 = vlaneseq
        %v729 = vshrl.u32 %v728, 7
        %v730 = vadd.s32 %v729, 16
        %731 = vset.pattern.permute.xlu0 %v730
        %732 = vperm.xlu0 %731, %v715
        %v733 = vpop.permute.xlu0 %732
        %v734 = vperm.slane %v490, 6
        %v735 = vlaneseq
        %v736 = vshrl.u32 %v735, 7
        %738 = vset.pattern.permute.xlu0 %v736
        %739 = vperm.xlu0 %738, %v734
        %v740 = vpop.permute.xlu0 %739
        %v741 = vlaneseq
        %v742 = vshrl.u32 %v741, 7
        %v743 = vadd.s32 %v742, 8
        %744 = vset.pattern.permute.xlu0 %v743
        %745 = vperm.xlu0 %744, %v734
        %v746 = vpop.permute.xlu0 %745
        %v747 = vlaneseq
        %v748 = vshrl.u32 %v747, 7
        %v749 = vadd.s32 %v748, 16
        %750 = vset.pattern.permute.xlu0 %v749
        %751 = vperm.xlu0 %750, %v734
        %v752 = vpop.permute.xlu0 %751
        %v753 = vperm.slane %v490, 7
        %v754 = vlaneseq
        %v755 = vshrl.u32 %v754, 7
        %757 = vset.pattern.permute.xlu0 %v755
        %758 = vperm.xlu0 %757, %v753
        %v759 = vpop.permute.xlu0 %758
        %v760 = vlaneseq
        %v761 = vshrl.u32 %v760, 7
        %v762 = vadd.s32 %v761, 8
        %763 = vset.pattern.permute.xlu0 %v762
        %764 = vperm.xlu0 %763, %v753
        %v765 = vpop.permute.xlu0 %764
        %v766 = vlaneseq
        %v767 = vshrl.u32 %v766, 7
        %v768 = vadd.s32 %v767, 16
        %769 = vset.pattern.permute.xlu0 %v768
        %770 = vperm.xlu0 %769, %v753
        %v771 = vpop.permute.xlu0 %770
        %v772 = vperm.slane %v491, 0
        %v773 = vlaneseq
        %v774 = vshrl.u32 %v773, 7
        %776 = vset.pattern.permute.xlu0 %v774
        %777 = vperm.xlu0 %776, %v772
        %v778 = vpop.permute.xlu0 %777
        %v779 = vlaneseq
        %v780 = vshrl.u32 %v779, 7
        %v781 = vadd.s32 %v780, 8
        %782 = vset.pattern.permute.xlu0 %v781
        %783 = vperm.xlu0 %782, %v772
        %v784 = vpop.permute.xlu0 %783
        %v785 = vlaneseq
        %v786 = vshrl.u32 %v785, 7
        %v787 = vadd.s32 %v786, 16
        %788 = vset.pattern.permute.xlu0 %v787
        %789 = vperm.xlu0 %788, %v772
        %v790 = vpop.permute.xlu0 %789
        %v791 = vperm.slane %v491, 1
        %v792 = vlaneseq
        %v793 = vshrl.u32 %v792, 7
        %795 = vset.pattern.permute.xlu0 %v793
        %796 = vperm.xlu0 %795, %v791
        %v797 = vpop.permute.xlu0 %796
        %v798 = vlaneseq
        %v799 = vshrl.u32 %v798, 7
        %v800 = vadd.s32 %v799, 8
        %801 = vset.pattern.permute.xlu0 %v800
        %802 = vperm.xlu0 %801, %v791
        %v803 = vpop.permute.xlu0 %802
        %v804 = vlaneseq
        %v805 = vshrl.u32 %v804, 7
        %v806 = vadd.s32 %v805, 16
        %807 = vset.pattern.permute.xlu0 %v806
        %808 = vperm.xlu0 %807, %v791
        %v809 = vpop.permute.xlu0 %808
        %v810 = vperm.slane %v491, 2
        %v811 = vlaneseq
        %v812 = vshrl.u32 %v811, 7
        %814 = vset.pattern.permute.xlu0 %v812
        %815 = vperm.xlu0 %814, %v810
        %v816 = vpop.permute.xlu0 %815
        %v817 = vlaneseq
        %v818 = vshrl.u32 %v817, 7
        %v819 = vadd.s32 %v818, 8
        %820 = vset.pattern.permute.xlu0 %v819
        %821 = vperm.xlu0 %820, %v810
        %v822 = vpop.permute.xlu0 %821
        %v823 = vlaneseq
        %v824 = vshrl.u32 %v823, 7
        %v825 = vadd.s32 %v824, 16
        %826 = vset.pattern.permute.xlu0 %v825
        %827 = vperm.xlu0 %826, %v810
        %v828 = vpop.permute.xlu0 %827
        %v829 = vperm.slane %v491, 3
        %v830 = vlaneseq
        %v831 = vshrl.u32 %v830, 7
        %833 = vset.pattern.permute.xlu0 %v831
        %834 = vperm.xlu0 %833, %v829
        %v835 = vpop.permute.xlu0 %834
        %v836 = vlaneseq
        %v837 = vshrl.u32 %v836, 7
        %v838 = vadd.s32 %v837, 8
        %839 = vset.pattern.permute.xlu0 %v838
        %840 = vperm.xlu0 %839, %v829
        %v841 = vpop.permute.xlu0 %840
        %v842 = vlaneseq
        %v843 = vshrl.u32 %v842, 7
        %v844 = vadd.s32 %v843, 16
        %845 = vset.pattern.permute.xlu0 %v844
        %846 = vperm.xlu0 %845, %v829
        %v847 = vpop.permute.xlu0 %846
        %v848 = vperm.slane %v491, 4
        %v849 = vlaneseq
        %v850 = vshrl.u32 %v849, 7
        %852 = vset.pattern.permute.xlu0 %v850
        %853 = vperm.xlu0 %852, %v848
        %v854 = vpop.permute.xlu0 %853
        %v855 = vlaneseq
        %v856 = vshrl.u32 %v855, 7
        %v857 = vadd.s32 %v856, 8
        %858 = vset.pattern.permute.xlu0 %v857
        %859 = vperm.xlu0 %858, %v848
        %v860 = vpop.permute.xlu0 %859
        %v861 = vlaneseq
        %v862 = vshrl.u32 %v861, 7
        %v863 = vadd.s32 %v862, 16
        %864 = vset.pattern.permute.xlu0 %v863
        %865 = vperm.xlu0 %864, %v848
        %v866 = vpop.permute.xlu0 %865
        %v867 = vperm.slane %v491, 5
        %v868 = vlaneseq
        %v869 = vshrl.u32 %v868, 7
        %871 = vset.pattern.permute.xlu0 %v869
        %872 = vperm.xlu0 %871, %v867
        %v873 = vpop.permute.xlu0 %872
        %v874 = vlaneseq
        %v875 = vshrl.u32 %v874, 7
        %v876 = vadd.s32 %v875, 8
        %877 = vset.pattern.permute.xlu0 %v876
        %878 = vperm.xlu0 %877, %v867
        %v879 = vpop.permute.xlu0 %878
        %v880 = vlaneseq
        %v881 = vshrl.u32 %v880, 7
        %v882 = vadd.s32 %v881, 16
        %883 = vset.pattern.permute.xlu0 %v882
        %884 = vperm.xlu0 %883, %v867
        %v885 = vpop.permute.xlu0 %884
        %v886 = vperm.slane %v491, 6
        %v887 = vlaneseq
        %v888 = vshrl.u32 %v887, 7
        %890 = vset.pattern.permute.xlu0 %v888
        %891 = vperm.xlu0 %890, %v886
        %v892 = vpop.permute.xlu0 %891
        %v893 = vlaneseq
        %v894 = vshrl.u32 %v893, 7
        %v895 = vadd.s32 %v894, 8
        %896 = vset.pattern.permute.xlu0 %v895
        %897 = vperm.xlu0 %896, %v886
        %v898 = vpop.permute.xlu0 %897
        %v899 = vlaneseq
        %v900 = vshrl.u32 %v899, 7
        %v901 = vadd.s32 %v900, 16
        %902 = vset.pattern.permute.xlu0 %v901
        %903 = vperm.xlu0 %902, %v886
        %v904 = vpop.permute.xlu0 %903
        %v905 = vperm.slane %v491, 7
        %v906 = vlaneseq
        %v907 = vshrl.u32 %v906, 7
        %909 = vset.pattern.permute.xlu0 %v907
        %910 = vperm.xlu0 %909, %v905
        %v911 = vpop.permute.xlu0 %910
        %v912 = vlaneseq
        %v913 = vshrl.u32 %v912, 7
        %v914 = vadd.s32 %v913, 8
        %915 = vset.pattern.permute.xlu0 %v914
        %916 = vperm.xlu0 %915, %v905
        %v917 = vpop.permute.xlu0 %916
        %v918 = vlaneseq
        %v919 = vshrl.u32 %v918, 7
        %v920 = vadd.s32 %v919, 16
        %921 = vset.pattern.permute.xlu0 %v920
        %922 = vperm.xlu0 %921, %v905
        %v923 = vpop.permute.xlu0 %922
        %v924 = vperm.slane %v492, 0
        %v925 = vlaneseq
        %v926 = vshrl.u32 %v925, 7
        %928 = vset.pattern.permute.xlu0 %v926
        %929 = vperm.xlu0 %928, %v924
        %v930 = vpop.permute.xlu0 %929
        %v931 = vlaneseq
        %v932 = vshrl.u32 %v931, 7
        %v933 = vadd.s32 %v932, 8
        %934 = vset.pattern.permute.xlu0 %v933
        %935 = vperm.xlu0 %934, %v924
        %v936 = vpop.permute.xlu0 %935
        %v937 = vlaneseq
        %v938 = vshrl.u32 %v937, 7
        %v939 = vadd.s32 %v938, 16
        %940 = vset.pattern.permute.xlu0 %v939
        %941 = vperm.xlu0 %940, %v924
        %v942 = vpop.permute.xlu0 %941
        %v943 = vperm.slane %v492, 1
        %v944 = vlaneseq
        %v945 = vshrl.u32 %v944, 7
        %947 = vset.pattern.permute.xlu0 %v945
        %948 = vperm.xlu0 %947, %v943
        %v949 = vpop.permute.xlu0 %948
        %v950 = vlaneseq
        %v951 = vshrl.u32 %v950, 7
        %v952 = vadd.s32 %v951, 8
        %953 = vset.pattern.permute.xlu0 %v952
        %954 = vperm.xlu0 %953, %v943
        %v955 = vpop.permute.xlu0 %954
        %v956 = vlaneseq
        %v957 = vshrl.u32 %v956, 7
        %v958 = vadd.s32 %v957, 16
        %959 = vset.pattern.permute.xlu0 %v958
        %960 = vperm.xlu0 %959, %v943
        %v961 = vpop.permute.xlu0 %960
        %v962 = vperm.slane %v492, 2
        %v963 = vlaneseq
        %v964 = vshrl.u32 %v963, 7
        %966 = vset.pattern.permute.xlu0 %v964
        %967 = vperm.xlu0 %966, %v962
        %v968 = vpop.permute.xlu0 %967
        %v969 = vlaneseq
        %v970 = vshrl.u32 %v969, 7
        %v971 = vadd.s32 %v970, 8
        %972 = vset.pattern.permute.xlu0 %v971
        %973 = vperm.xlu0 %972, %v962
        %v974 = vpop.permute.xlu0 %973
        %v975 = vlaneseq
        %v976 = vshrl.u32 %v975, 7
        %v977 = vadd.s32 %v976, 16
        %978 = vset.pattern.permute.xlu0 %v977
        %979 = vperm.xlu0 %978, %v962
        %v980 = vpop.permute.xlu0 %979
        %v981 = vperm.slane %v492, 3
        %v982 = vlaneseq
        %v983 = vshrl.u32 %v982, 7
        %985 = vset.pattern.permute.xlu0 %v983
        %986 = vperm.xlu0 %985, %v981
        %v987 = vpop.permute.xlu0 %986
        %v988 = vlaneseq
        %v989 = vshrl.u32 %v988, 7
        %v990 = vadd.s32 %v989, 8
        %991 = vset.pattern.permute.xlu0 %v990
        %992 = vperm.xlu0 %991, %v981
        %v993 = vpop.permute.xlu0 %992
        %v994 = vlaneseq
        %v995 = vshrl.u32 %v994, 7
        %v996 = vadd.s32 %v995, 16
        %997 = vset.pattern.permute.xlu0 %v996
        %998 = vperm.xlu0 %997, %v981
        %v999 = vpop.permute.xlu0 %998
        %v1000 = vperm.slane %v492, 4
        %v1001 = vlaneseq
        %v1002 = vshrl.u32 %v1001, 7
        %1004 = vset.pattern.permute.xlu0 %v1002
        %1005 = vperm.xlu0 %1004, %v1000
        %v1006 = vpop.permute.xlu0 %1005
        %v1007 = vlaneseq
        %v1008 = vshrl.u32 %v1007, 7
        %v1009 = vadd.s32 %v1008, 8
        %1010 = vset.pattern.permute.xlu0 %v1009
        %1011 = vperm.xlu0 %1010, %v1000
        %v1012 = vpop.permute.xlu0 %1011
        %v1013 = vlaneseq
        %v1014 = vshrl.u32 %v1013, 7
        %v1015 = vadd.s32 %v1014, 16
        %1016 = vset.pattern.permute.xlu0 %v1015
        %1017 = vperm.xlu0 %1016, %v1000
        %v1018 = vpop.permute.xlu0 %1017
        %v1019 = vperm.slane %v492, 5
        %v1020 = vlaneseq
        %v1021 = vshrl.u32 %v1020, 7
        %1023 = vset.pattern.permute.xlu0 %v1021
        %1024 = vperm.xlu0 %1023, %v1019
        %v1025 = vpop.permute.xlu0 %1024
        %v1026 = vlaneseq
        %v1027 = vshrl.u32 %v1026, 7
        %v1028 = vadd.s32 %v1027, 8
        %1029 = vset.pattern.permute.xlu0 %v1028
        %1030 = vperm.xlu0 %1029, %v1019
        %v1031 = vpop.permute.xlu0 %1030
        %v1032 = vlaneseq
        %v1033 = vshrl.u32 %v1032, 7
        %v1034 = vadd.s32 %v1033, 16
        %1035 = vset.pattern.permute.xlu0 %v1034
        %1036 = vperm.xlu0 %1035, %v1019
        %v1037 = vpop.permute.xlu0 %1036
        %v1038 = vperm.slane %v492, 6
        %v1039 = vlaneseq
        %v1040 = vshrl.u32 %v1039, 7
        %1042 = vset.pattern.permute.xlu0 %v1040
        %1043 = vperm.xlu0 %1042, %v1038
        %v1044 = vpop.permute.xlu0 %1043
        %v1045 = vlaneseq
        %v1046 = vshrl.u32 %v1045, 7
        %v1047 = vadd.s32 %v1046, 8
        %1048 = vset.pattern.permute.xlu0 %v1047
        %1049 = vperm.xlu0 %1048, %v1038
        %v1050 = vpop.permute.xlu0 %1049
        %v1051 = vlaneseq
        %v1052 = vshrl.u32 %v1051, 7
        %v1053 = vadd.s32 %v1052, 16
        %1054 = vset.pattern.permute.xlu0 %v1053
        %1055 = vperm.xlu0 %1054, %v1038
        %v1056 = vpop.permute.xlu0 %1055
        %v1057 = vperm.slane %v492, 7
        %v1058 = vlaneseq
        %v1059 = vshrl.u32 %v1058, 7
        %1061 = vset.pattern.permute.xlu0 %v1059
        %1062 = vperm.xlu0 %1061, %v1057
        %v1063 = vpop.permute.xlu0 %1062
        %v1064 = vlaneseq
        %v1065 = vshrl.u32 %v1064, 7
        %v1066 = vadd.s32 %v1065, 8
        %1067 = vset.pattern.permute.xlu0 %v1066
        %1068 = vperm.xlu0 %1067, %v1057
        %v1069 = vpop.permute.xlu0 %1068
        %v1070 = vlaneseq
        %v1071 = vshrl.u32 %v1070, 7
        %v1072 = vadd.s32 %v1071, 16
        %1073 = vset.pattern.permute.xlu0 %v1072
        %1074 = vperm.xlu0 %1073, %v1057
        %v1075 = vpop.permute.xlu0 %1074
        %v1079 = vrot.slane %v617, 1
        %v1080 = vrot.slane %v617, 2
        %v1081 = vrot.slane %v617, 3
        %v1082 = vrot.slane %v617, 4
        %v1083 = vrot.slane %v617, 5
        %v1084 = vrot.slane %v617, 6
        %v1085 = vrot.slane %v617, 7
        %v1086 = vrot.slane %v618, 1
        %v1087 = vrot.slane %v618, 2
        %v1088 = vrot.slane %v618, 3
        %v1089 = vrot.slane %v618, 4
        %v1090 = vrot.slane %v618, 5
        %v1091 = vrot.slane %v618, 6
        %v1092 = vrot.slane %v618, 7
        %v1093 = vrot.slane %v619, 1
        %v1094 = vrot.slane %v619, 2
        %v1095 = vrot.slane %v619, 3
        %v1096 = vrot.slane %v619, 4
        %v1097 = vrot.slane %v619, 5
        %v1098 = vrot.slane %v619, 6
        %v1099 = vrot.slane %v619, 7
        %v1100 = vperm.slane %v617, 0
        %v1101 = vperm.slane %v1079, 0
        %v1102 = vperm.slane %v1080, 0
        %v1103 = vperm.slane %v1081, 0
        %v1104 = vperm.slane %v1082, 0
        %v1105 = vperm.slane %v1083, 0
        %v1106 = vperm.slane %v1084, 0
        %v1107 = vperm.slane %v1085, 0
        %v1108 = vperm.slane %v618, 0
        %v1109 = vperm.slane %v1086, 0
        %v1110 = vperm.slane %v1087, 0
        %v1111 = vperm.slane %v1088, 0
        %v1112 = vperm.slane %v1089, 0
        %v1113 = vperm.slane %v1090, 0
        %v1114 = vperm.slane %v1091, 0
        %v1115 = vperm.slane %v1092, 0
        %v1116 = vperm.slane %v619, 0
        %v1117 = vperm.slane %v1093, 0
        %v1118 = vperm.slane %v1094, 0
        %v1119 = vperm.slane %v1095, 0
        %v1120 = vperm.slane %v1096, 0
        %v1121 = vperm.slane %v1097, 0
        %v1122 = vperm.slane %v1098, 0
        %v1123 = vperm.slane %v1099, 0
        %v1148 = vmul.f32 %v626, %v1100
        %v1149 = vmul.f32 %v632, %v1100
        %v1150 = vmul.f32 %v638, %v1100
        %v1151 = vmul.f32 %v645, %v1101
        %v1152 = vmul.f32 %v651, %v1101
        %v1153 = vmul.f32 %v657, %v1101
        %v1154 = vmul.f32 %v664, %v1102
        %v1155 = vmul.f32 %v670, %v1102
        %v1156 = vmul.f32 %v676, %v1102
        %v1157 = vmul.f32 %v683, %v1103
        %v1158 = vmul.f32 %v689, %v1103
        %v1159 = vmul.f32 %v695, %v1103
        %v1160 = vmul.f32 %v702, %v1104
        %v1161 = vmul.f32 %v708, %v1104
        %v1162 = vmul.f32 %v714, %v1104
        %v1163 = vmul.f32 %v721, %v1105
        %v1164 = vmul.f32 %v727, %v1105
        %v1165 = vmul.f32 %v733, %v1105
        %v1166 = vmul.f32 %v740, %v1106
        %v1167 = vmul.f32 %v746, %v1106
        %v1168 = vmul.f32 %v752, %v1106
        %v1169 = vmul.f32 %v759, %v1107
        %v1170 = vmul.f32 %v765, %v1107
        %v1171 = vmul.f32 %v771, %v1107
        %v1172 = vmul.f32 %v778, %v1108
        %v1173 = vmul.f32 %v784, %v1108
        %v1174 = vmul.f32 %v790, %v1108
        %v1175 = vmul.f32 %v797, %v1109
        %v1176 = vmul.f32 %v803, %v1109
        %v1177 = vmul.f32 %v809, %v1109
        %v1178 = vmul.f32 %v816, %v1110
        %v1179 = vmul.f32 %v822, %v1110
        %v1180 = vmul.f32 %v828, %v1110
        %v1181 = vmul.f32 %v835, %v1111
        %v1182 = vmul.f32 %v841, %v1111
        %v1183 = vmul.f32 %v847, %v1111
        %v1184 = vmul.f32 %v854, %v1112
        %v1185 = vmul.f32 %v860, %v1112
        %v1186 = vmul.f32 %v866, %v1112
        %v1187 = vmul.f32 %v873, %v1113
        %v1188 = vmul.f32 %v879, %v1113
        %v1189 = vmul.f32 %v885, %v1113
        %v1190 = vmul.f32 %v892, %v1114
        %v1191 = vmul.f32 %v898, %v1114
        %v1192 = vmul.f32 %v904, %v1114
        %v1193 = vmul.f32 %v911, %v1115
        %v1194 = vmul.f32 %v917, %v1115
        %v1195 = vmul.f32 %v923, %v1115
        %v1196 = vmul.f32 %v930, %v1116
        %v1197 = vmul.f32 %v936, %v1116
        %v1198 = vmul.f32 %v942, %v1116
        %v1199 = vmul.f32 %v949, %v1117
        %v1200 = vmul.f32 %v955, %v1117
        %v1201 = vmul.f32 %v961, %v1117
        %v1202 = vmul.f32 %v968, %v1118
        %v1203 = vmul.f32 %v974, %v1118
        %v1204 = vmul.f32 %v980, %v1118
        %v1205 = vmul.f32 %v987, %v1119
        %v1206 = vmul.f32 %v993, %v1119
        %v1207 = vmul.f32 %v999, %v1119
        %v1208 = vmul.f32 %v1006, %v1120
        %v1209 = vmul.f32 %v1012, %v1120
        %v1210 = vmul.f32 %v1018, %v1120
        %v1211 = vmul.f32 %v1025, %v1121
        %v1212 = vmul.f32 %v1031, %v1121
        %v1213 = vmul.f32 %v1037, %v1121
        %v1214 = vmul.f32 %v1044, %v1122
        %v1215 = vmul.f32 %v1050, %v1122
        %v1216 = vmul.f32 %v1056, %v1122
        %v1217 = vmul.f32 %v1063, %v1123
        %v1218 = vmul.f32 %v1069, %v1123
        %v1219 = vmul.f32 %v1075, %v1123
        %v1220 = vmax.f32 %v1148, %v1154
        %v1221 = vmax.f32 %v1151, %v1157
        %v1222 = vmax.f32 %v1220, %v1160
        %v1223 = vmax.f32 %v1221, %v1163
        %v1224 = vmax.f32 %v1222, %v1166
        %v1225 = vmax.f32 %v1223, %v1169
        %v1226 = vmax.f32 %v1224, %v1172
        %v1227 = vmax.f32 %v1225, %v1175
        %v1228 = vmax.f32 %v1226, %v1178
        %v1229 = vmax.f32 %v1227, %v1181
        %v1230 = vmax.f32 %v1228, %v1184
        %v1231 = vmax.f32 %v1229, %v1187
        %v1232 = vmax.f32 %v1230, %v1190
        %v1233 = vmax.f32 %v1231, %v1193
        %v1234 = vmax.f32 %v1232, %v1196
        %v1235 = vmax.f32 %v1233, %v1199
        %v1236 = vmax.f32 %v1234, %v1202
        %v1237 = vmax.f32 %v1235, %v1205
        %v1238 = vmax.f32 %v1236, %v1208
        %v1239 = vmax.f32 %v1237, %v1211
        %v1240 = vmax.f32 %v1238, %v1214
        %v1241 = vmax.f32 %v1239, %v1217
        %v1242 = vmax.f32 %v1240, %v1241
        %v1243 = vmax.f32 %v1149, %v1155
        %v1244 = vmax.f32 %v1152, %v1158
        %v1245 = vmax.f32 %v1243, %v1161
        %v1246 = vmax.f32 %v1244, %v1164
        %v1247 = vmax.f32 %v1245, %v1167
        %v1248 = vmax.f32 %v1246, %v1170
        %v1249 = vmax.f32 %v1247, %v1173
        %v1250 = vmax.f32 %v1248, %v1176
        %v1251 = vmax.f32 %v1249, %v1179
        %v1252 = vmax.f32 %v1250, %v1182
        %v1253 = vmax.f32 %v1251, %v1185
        %v1254 = vmax.f32 %v1252, %v1188
        %v1255 = vmax.f32 %v1253, %v1191
        %v1256 = vmax.f32 %v1254, %v1194
        %v1257 = vmax.f32 %v1255, %v1197
        %v1258 = vmax.f32 %v1256, %v1200
        %v1259 = vmax.f32 %v1257, %v1203
        %v1260 = vmax.f32 %v1258, %v1206
        %v1261 = vmax.f32 %v1259, %v1209
        %v1262 = vmax.f32 %v1260, %v1212
        %v1263 = vmax.f32 %v1261, %v1215
        %v1264 = vmax.f32 %v1262, %v1218
        %v1265 = vmax.f32 %v1263, %v1264
        %v1266 = vmax.f32 %v1150, %v1156
        %v1267 = vmax.f32 %v1153, %v1159
        %v1268 = vmax.f32 %v1266, %v1162
        %v1269 = vmax.f32 %v1267, %v1165
        %v1270 = vmax.f32 %v1268, %v1168
        %v1271 = vmax.f32 %v1269, %v1171
        %v1272 = vmax.f32 %v1270, %v1174
        %v1273 = vmax.f32 %v1271, %v1177
        %v1274 = vmax.f32 %v1272, %v1180
        %v1275 = vmax.f32 %v1273, %v1183
        %v1276 = vmax.f32 %v1274, %v1186
        %v1277 = vmax.f32 %v1275, %v1189
        %v1278 = vmax.f32 %v1276, %v1192
        %v1279 = vmax.f32 %v1277, %v1195
        %v1280 = vmax.f32 %v1278, %v1198
        %v1281 = vmax.f32 %v1279, %v1201
        %v1282 = vmax.f32 %v1280, %v1204
        %v1283 = vmax.f32 %v1281, %v1207
        %v1284 = vmax.f32 %v1282, %v1210
        %v1285 = vmax.f32 %v1283, %v1213
        %v1286 = vmax.f32 %v1284, %v1216
        %v1287 = vmax.f32 %v1285, %v1219
        %v1288 = vmax.f32 %v1286, %v1287
        %v1289 = vmax.f32 %v1242, 0.0
        %v1290 = vmax.f32 %v1265, 0.0
        %v1291 = vmax.f32 %v1288, 0.0
        %v1292 = vpack.c.bf16 %v1290, %v1289
        %v1293 = vpack.c.bf16 %v1291, %v1291
        %v1310 = vunpack.c.l.b16 %v525
        %v1311 = vunpack.c.l.b16 %v526
        %v1312 = vunpack.c.l.b16 %v527
        %v1313 = vunpack.c.l.b16 %v528
        %v1314 = vunpack.c.l.b16 %v529
        %v1315 = vunpack.c.l.b16 %v530
        %v1316 = vunpack.c.l.b16 %v531
        %v1317 = vunpack.c.l.b16 %v532
        %v1318 = vunpack.c.l.b16 %v533
        %v1319 = vunpack.c.l.b16 %v534
        %v1320 = vunpack.c.l.b16 %v535
        %v1321 = vunpack.c.l.b16 %v536
        %v1322 = vunpack.c.l.b16 %v537
        %v1323 = vunpack.c.l.b16 %v538
        %v1324 = vunpack.c.l.b16 %v539
        %v1325 = vunpack.c.l.b16 %v540
        %v1326 = vpack.c.b16 %v1311, %v1310
        %v1327 = vpack.c.b16 %v1313, %v1312
        %v1328 = vpack.c.b16 %v1315, %v1314
        %v1329 = vpack.c.b16 %v1317, %v1316
        %v1330 = vpack.c.b16 %v1319, %v1318
        %v1331 = vpack.c.b16 %v1321, %v1320
        %v1332 = vpack.c.b16 %v1323, %v1322
        %v1333 = vpack.c.b16 %v1325, %v1324
        %1342 = vmatpush.bf16.msra.mxu0 %v1333
        %1343 = vmatpush.bf16.msra.mxu0 %v1332
        %1344 = vmatpush.bf16.msra.mxu0 %v1331
        %1345 = vmatpush.bf16.msra.mxu0 %v1330
        %1346 = vmatpush.bf16.msra.mxu0 %v1329
        %1347 = vmatpush.bf16.msra.mxu0 %v1328
        %1348 = vmatpush.bf16.msra.mxu0 %v1327
        %1349 = vmatpush.bf16.msra.mxu0 %v1326
        %1350 = vmatmul.bf16.gmra.mxu0 %v1292
        %v1351 = vpop.f32.mrf.mxu0
        %v1352 = vadd.f32 0.0, %v1351
        %v1353 = vpop.f32.mrf.mxu0
        %v1354 = vadd.f32 0.0, %v1353
        %1355 = vmatmul.bf16.gmra.mxu0 %v1293
        %v1356 = vpop.f32.mrf.mxu0
        %v1357 = vadd.f32 0.0, %v1356
        %v1358 = vpop.f32.mrf.mxu0
        %1359 = vdwg.mxu0
        %v1376 = vunpack.c.l.b16 %v509
        %v1377 = vunpack.c.l.b16 %v510
        %v1378 = vunpack.c.l.b16 %v511
        %v1379 = vunpack.c.l.b16 %v512
        %v1380 = vunpack.c.l.b16 %v513
        %v1381 = vunpack.c.l.b16 %v514
        %v1382 = vunpack.c.l.b16 %v515
        %v1383 = vunpack.c.l.b16 %v516
        %v1384 = vunpack.c.l.b16 %v517
        %v1385 = vunpack.c.l.b16 %v518
        %v1386 = vunpack.c.l.b16 %v519
        %v1387 = vunpack.c.l.b16 %v520
        %v1388 = vunpack.c.l.b16 %v521
        %v1389 = vunpack.c.l.b16 %v522
        %v1390 = vunpack.c.l.b16 %v523
        %v1391 = vunpack.c.l.b16 %v524
        %v1392 = vpack.c.b16 %v1377, %v1376
        %v1393 = vpack.c.b16 %v1379, %v1378
        %v1394 = vpack.c.b16 %v1381, %v1380
        %v1395 = vpack.c.b16 %v1383, %v1382
        %v1396 = vpack.c.b16 %v1385, %v1384
        %v1397 = vpack.c.b16 %v1387, %v1386
        %v1398 = vpack.c.b16 %v1389, %v1388
        %v1399 = vpack.c.b16 %v1391, %v1390
        %1408 = vmatpush.bf16.msra.mxu0 %v1399
        %1409 = vmatpush.bf16.msra.mxu0 %v1398
        %1410 = vmatpush.bf16.msra.mxu0 %v1397
        %1411 = vmatpush.bf16.msra.mxu0 %v1396
        %1412 = vmatpush.bf16.msra.mxu0 %v1395
        %1413 = vmatpush.bf16.msra.mxu0 %v1394
        %1414 = vmatpush.bf16.msra.mxu0 %v1393
        %1415 = vmatpush.bf16.msra.mxu0 %v1392
        %1416 = vmatmul.bf16.gmra.mxu0 %v546
        %v1417 = vpop.f32.mrf.mxu0
        %v1418 = vadd.f32 %v1352, %v1417
        %v1419 = vpop.f32.mrf.mxu0
        %v1420 = vadd.f32 %v1354, %v1419
        %1421 = vmatmul.bf16.gmra.mxu0 %v547
        %v1422 = vpop.f32.mrf.mxu0
        %v1423 = vadd.f32 %v1357, %v1422
        %v1424 = vpop.f32.mrf.mxu0
        %1425 = vdwg.mxu0
        %v1427 = vperm.slane %v542, 0
        %v1429 = vadd.f32 %v1418, %v1427
        %v1430 = vadd.f32 %v1420, %v1427
        %v1431 = vadd.f32 %v1423, %v1427
        %v1432 = vmax.f32 %v1429, 0.0
        %v1433 = vmax.f32 %v1430, 0.0
        %v1434 = vmax.f32 %v1431, 0.0
        %1435 = vst [vmem:[%s484] sm:$0xff] %v1432
        %1436 = vst [vmem:[%s484 + $0x8] sm:$0xff] %v1433
        %1437 = vst [vmem:[%s484 + $0x10] sm:$0xff] %v1434
        %v1438 = vpack.c.bf16 %v1433, %v1432
        %v1439 = vpack.c.bf16 %v1434, %v1434
        %1440 = vmatpush.bf16.msra.mxu0 %v590
        %1441 = vmatpush.bf16.msra.mxu0 %v589
        %1442 = vmatpush.bf16.msra.mxu0 %v588
        %1443 = vmatpush.bf16.msra.mxu0 %v587
        %1444 = vmatpush.bf16.msra.mxu0 %v586
        %1445 = vmatpush.bf16.msra.mxu0 %v585
        %1446 = vmatpush.bf16.msra.mxu0 %v584
        %1447 = vmatpush.bf16.msra.mxu0 %v583
        %1448 = vmatmul.bf16.gmra.mxu0 %v1438
        %v1449 = vpop.f32.mrf.mxu0
        %v1450 = vadd.f32 %v549, %v1449
        %v1451 = vpop.f32.mrf.mxu0
        %v1452 = vadd.f32 %v549, %v1451
        %1453 = vmatmul.bf16.gmra.mxu0 %v1439
        %v1454 = vpop.f32.mrf.mxu0
        %v1455 = vadd.f32 %v549, %v1454
        %v1456 = vpop.f32.mrf.mxu0
        %1457 = vdwg.mxu0
        %v1458 = vmax.f32 %v1450, 0.0
        %v1459 = vmax.f32 %v1452, 0.0
        %v1460 = vmax.f32 %v1455, 0.0
        %v1464 = vrot.slane %v1458, 1
        %v1465 = vrot.slane %v1458, 2
        %v1466 = vrot.slane %v1458, 3
        %v1467 = vrot.slane %v1458, 4
        %v1468 = vrot.slane %v1458, 5
        %v1469 = vrot.slane %v1458, 6
        %v1470 = vrot.slane %v1458, 7
        %v1471 = vrot.slane %v1459, 1
        %v1472 = vrot.slane %v1459, 2
        %v1473 = vrot.slane %v1459, 3
        %v1474 = vrot.slane %v1459, 4
        %v1475 = vrot.slane %v1459, 5
        %v1476 = vrot.slane %v1459, 6
        %v1477 = vrot.slane %v1459, 7
        %v1478 = vrot.slane %v1460, 1
        %v1479 = vrot.slane %v1460, 2
        %v1480 = vrot.slane %v1460, 3
        %v1481 = vrot.slane %v1460, 4
        %v1482 = vrot.slane %v1460, 5
        %v1483 = vrot.slane %v1460, 6
        %v1484 = vrot.slane %v1460, 7
        %v1485 = vperm.slane %v1458, 0
        %v1486 = vperm.slane %v1464, 0
        %v1487 = vperm.slane %v1465, 0
        %v1488 = vperm.slane %v1466, 0
        %v1489 = vperm.slane %v1467, 0
        %v1490 = vperm.slane %v1468, 0
        %v1491 = vperm.slane %v1469, 0
        %v1492 = vperm.slane %v1470, 0
        %v1493 = vperm.slane %v1459, 0
        %v1494 = vperm.slane %v1471, 0
        %v1495 = vperm.slane %v1472, 0
        %v1496 = vperm.slane %v1473, 0
        %v1497 = vperm.slane %v1474, 0
        %v1498 = vperm.slane %v1475, 0
        %v1499 = vperm.slane %v1476, 0
        %v1500 = vperm.slane %v1477, 0
        %v1501 = vperm.slane %v1460, 0
        %v1502 = vperm.slane %v1478, 0
        %v1503 = vperm.slane %v1479, 0
        %v1504 = vperm.slane %v1480, 0
        %v1505 = vperm.slane %v1481, 0
        %v1506 = vperm.slane %v1482, 0
        %v1507 = vperm.slane %v1483, 0
        %v1508 = vperm.slane %v1484, 0
        %v1533 = vmul.f32 %v626, %v1485
        %v1534 = vmul.f32 %v632, %v1485
        %v1535 = vmul.f32 %v638, %v1485
        %v1536 = vmul.f32 %v645, %v1486
        %v1537 = vmul.f32 %v651, %v1486
        %v1538 = vmul.f32 %v657, %v1486
        %v1539 = vmul.f32 %v664, %v1487
        %v1540 = vmul.f32 %v670, %v1487
        %v1541 = vmul.f32 %v676, %v1487
        %v1542 = vmul.f32 %v683, %v1488
        %v1543 = vmul.f32 %v689, %v1488
        %v1544 = vmul.f32 %v695, %v1488
        %v1545 = vmul.f32 %v702, %v1489
        %v1546 = vmul.f32 %v708, %v1489
        %v1547 = vmul.f32 %v714, %v1489
        %v1548 = vmul.f32 %v721, %v1490
        %v1549 = vmul.f32 %v727, %v1490
        %v1550 = vmul.f32 %v733, %v1490
        %v1551 = vmul.f32 %v740, %v1491
        %v1552 = vmul.f32 %v746, %v1491
        %v1553 = vmul.f32 %v752, %v1491
        %v1554 = vmul.f32 %v759, %v1492
        %v1555 = vmul.f32 %v765, %v1492
        %v1556 = vmul.f32 %v771, %v1492
        %v1557 = vmul.f32 %v778, %v1493
        %v1558 = vmul.f32 %v784, %v1493
        %v1559 = vmul.f32 %v790, %v1493
        %v1560 = vmul.f32 %v797, %v1494
        %v1561 = vmul.f32 %v803, %v1494
        %v1562 = vmul.f32 %v809, %v1494
        %v1563 = vmul.f32 %v816, %v1495
        %v1564 = vmul.f32 %v822, %v1495
        %v1565 = vmul.f32 %v828, %v1495
        %v1566 = vmul.f32 %v835, %v1496
        %v1567 = vmul.f32 %v841, %v1496
        %v1568 = vmul.f32 %v847, %v1496
        %v1569 = vmul.f32 %v854, %v1497
        %v1570 = vmul.f32 %v860, %v1497
        %v1571 = vmul.f32 %v866, %v1497
        %v1572 = vmul.f32 %v873, %v1498
        %v1573 = vmul.f32 %v879, %v1498
        %v1574 = vmul.f32 %v885, %v1498
        %v1575 = vmul.f32 %v892, %v1499
        %v1576 = vmul.f32 %v898, %v1499
        %v1577 = vmul.f32 %v904, %v1499
        %v1578 = vmul.f32 %v911, %v1500
        %v1579 = vmul.f32 %v917, %v1500
        %v1580 = vmul.f32 %v923, %v1500
        %v1581 = vmul.f32 %v930, %v1501
        %v1582 = vmul.f32 %v936, %v1501
        %v1583 = vmul.f32 %v942, %v1501
        %v1584 = vmul.f32 %v949, %v1502
        %v1585 = vmul.f32 %v955, %v1502
        %v1586 = vmul.f32 %v961, %v1502
        %v1587 = vmul.f32 %v968, %v1503
        %v1588 = vmul.f32 %v974, %v1503
        %v1589 = vmul.f32 %v980, %v1503
        %v1590 = vmul.f32 %v987, %v1504
        %v1591 = vmul.f32 %v993, %v1504
        %v1592 = vmul.f32 %v999, %v1504
        %v1593 = vmul.f32 %v1006, %v1505
        %v1594 = vmul.f32 %v1012, %v1505
        %v1595 = vmul.f32 %v1018, %v1505
        %v1596 = vmul.f32 %v1025, %v1506
        %v1597 = vmul.f32 %v1031, %v1506
        %v1598 = vmul.f32 %v1037, %v1506
        %v1599 = vmul.f32 %v1044, %v1507
        %v1600 = vmul.f32 %v1050, %v1507
        %v1601 = vmul.f32 %v1056, %v1507
        %v1602 = vmul.f32 %v1063, %v1508
        %v1603 = vmul.f32 %v1069, %v1508
        %v1604 = vmul.f32 %v1075, %v1508
        %v1605 = vmax.f32 %v1533, %v1539
        %v1606 = vmax.f32 %v1536, %v1542
        %v1607 = vmax.f32 %v1605, %v1545
        %v1608 = vmax.f32 %v1606, %v1548
        %v1609 = vmax.f32 %v1607, %v1551
        %v1610 = vmax.f32 %v1608, %v1554
        %v1611 = vmax.f32 %v1609, %v1557
        %v1612 = vmax.f32 %v1610, %v1560
        %v1613 = vmax.f32 %v1611, %v1563
        %v1614 = vmax.f32 %v1612, %v1566
        %v1615 = vmax.f32 %v1613, %v1569
        %v1616 = vmax.f32 %v1614, %v1572
        %v1617 = vmax.f32 %v1615, %v1575
        %v1618 = vmax.f32 %v1616, %v1578
        %v1619 = vmax.f32 %v1617, %v1581
        %v1620 = vmax.f32 %v1618, %v1584
        %v1621 = vmax.f32 %v1619, %v1587
        %v1622 = vmax.f32 %v1620, %v1590
        %v1623 = vmax.f32 %v1621, %v1593
        %v1624 = vmax.f32 %v1622, %v1596
        %v1625 = vmax.f32 %v1623, %v1599
        %v1626 = vmax.f32 %v1624, %v1602
        %v1627 = vmax.f32 %v1625, %v1626
        %v1628 = vmax.f32 %v1534, %v1540
        %v1629 = vmax.f32 %v1537, %v1543
        %v1630 = vmax.f32 %v1628, %v1546
        %v1631 = vmax.f32 %v1629, %v1549
        %v1632 = vmax.f32 %v1630, %v1552
        %v1633 = vmax.f32 %v1631, %v1555
        %v1634 = vmax.f32 %v1632, %v1558
        %v1635 = vmax.f32 %v1633, %v1561
        %v1636 = vmax.f32 %v1634, %v1564
        %v1637 = vmax.f32 %v1635, %v1567
        %v1638 = vmax.f32 %v1636, %v1570
        %v1639 = vmax.f32 %v1637, %v1573
        %v1640 = vmax.f32 %v1638, %v1576
        %v1641 = vmax.f32 %v1639, %v1579
        %v1642 = vmax.f32 %v1640, %v1582
        %v1643 = vmax.f32 %v1641, %v1585
        %v1644 = vmax.f32 %v1642, %v1588
        %v1645 = vmax.f32 %v1643, %v1591
        %v1646 = vmax.f32 %v1644, %v1594
        %v1647 = vmax.f32 %v1645, %v1597
        %v1648 = vmax.f32 %v1646, %v1600
        %v1649 = vmax.f32 %v1647, %v1603
        %v1650 = vmax.f32 %v1648, %v1649
        %v1651 = vmax.f32 %v1535, %v1541
        %v1652 = vmax.f32 %v1538, %v1544
        %v1653 = vmax.f32 %v1651, %v1547
        %v1654 = vmax.f32 %v1652, %v1550
        %v1655 = vmax.f32 %v1653, %v1553
        %v1656 = vmax.f32 %v1654, %v1556
        %v1657 = vmax.f32 %v1655, %v1559
        %v1658 = vmax.f32 %v1656, %v1562
        %v1659 = vmax.f32 %v1657, %v1565
        %v1660 = vmax.f32 %v1658, %v1568
        %v1661 = vmax.f32 %v1659, %v1571
        %v1662 = vmax.f32 %v1660, %v1574
        %v1663 = vmax.f32 %v1661, %v1577
        %v1664 = vmax.f32 %v1662, %v1580
        %v1665 = vmax.f32 %v1663, %v1583
        %v1666 = vmax.f32 %v1664, %v1586
        %v1667 = vmax.f32 %v1665, %v1589
        %v1668 = vmax.f32 %v1666, %v1592
        %v1669 = vmax.f32 %v1667, %v1595
        %v1670 = vmax.f32 %v1668, %v1598
        %v1671 = vmax.f32 %v1669, %v1601
        %v1672 = vmax.f32 %v1670, %v1604
        %v1673 = vmax.f32 %v1671, %v1672
        %v1674 = vmax.f32 %v1627, 0.0
        %v1675 = vmax.f32 %v1650, 0.0
        %v1676 = vmax.f32 %v1673, 0.0
        %v1677 = vpack.c.bf16 %v1675, %v1674
        %v1678 = vpack.c.bf16 %v1676, %v1676
        %1679 = vmatpush.bf16.msra.mxu0 %v1333
        %1680 = vmatpush.bf16.msra.mxu0 %v1332
        %1681 = vmatpush.bf16.msra.mxu0 %v1331
        %1682 = vmatpush.bf16.msra.mxu0 %v1330
        %1683 = vmatpush.bf16.msra.mxu0 %v1329
        %1684 = vmatpush.bf16.msra.mxu0 %v1328
        %1685 = vmatpush.bf16.msra.mxu0 %v1327
        %1686 = vmatpush.bf16.msra.mxu0 %v1326
        %1687 = vmatmul.bf16.gmra.mxu0 %v1677
        %v1688 = vpop.f32.mrf.mxu0
        %v1689 = vadd.f32 0.0, %v1688
        %v1690 = vpop.f32.mrf.mxu0
        %v1691 = vadd.f32 0.0, %v1690
        %1692 = vmatmul.bf16.gmra.mxu0 %v1678
        %v1693 = vpop.f32.mrf.mxu0
        %v1694 = vadd.f32 0.0, %v1693
        %v1695 = vpop.f32.mrf.mxu0
        %1696 = vdwg.mxu0
        %1697 = vmatpush.bf16.msra.mxu0 %v1399
        %1698 = vmatpush.bf16.msra.mxu0 %v1398
        %1699 = vmatpush.bf16.msra.mxu0 %v1397
        %1700 = vmatpush.bf16.msra.mxu0 %v1396
        %1701 = vmatpush.bf16.msra.mxu0 %v1395
        %1702 = vmatpush.bf16.msra.mxu0 %v1394
        %1703 = vmatpush.bf16.msra.mxu0 %v1393
        %1704 = vmatpush.bf16.msra.mxu0 %v1392
        %1705 = vmatmul.bf16.gmra.mxu0 %v1438
        %v1706 = vpop.f32.mrf.mxu0
        %v1707 = vadd.f32 %v1689, %v1706
        %v1708 = vpop.f32.mrf.mxu0
        %v1709 = vadd.f32 %v1691, %v1708
        %1710 = vmatmul.bf16.gmra.mxu0 %v1439
        %v1711 = vpop.f32.mrf.mxu0
        %v1712 = vadd.f32 %v1694, %v1711
        %v1713 = vpop.f32.mrf.mxu0
        %1714 = vdwg.mxu0
        %v1715 = vadd.f32 %v1707, %v1427
        %v1716 = vadd.f32 %v1709, %v1427
        %v1717 = vadd.f32 %v1712, %v1427
        %v1718 = vmax.f32 %v1715, 0.0
        %v1719 = vmax.f32 %v1716, 0.0
        %v1720 = vmax.f32 %v1717, 0.0
        %1721 = vst [vmem:[%s489] sm:$0xff] %v1718
        %1722 = vst [vmem:[%s489 + $0x8] sm:$0xff] %v1719
        %1723 = vst [vmem:[%s489 + $0x10] sm:$0xff] %v1720
        %p1724 = scmp.lt.s32.totalorder %s26, 1
        %s1725 = scalar_select %p1724, %s26, 1
        %s1726 = smul.addr %s1725, 3
        %s1727 = smul.addr %s1726, 8
        %s1728 = scalar_lea.vmem %s7, %s1727
        %p1729 = scmp.lt.s32.totalorder %s26, 1
        %s1730 = scalar_select %p1729, %s26, 1
        %s1731 = smul.addr %s1730, 3
        %s1732 = smul.addr %s1731, 8
        %s1733 = scalar_lea.vmem %s8, %s1732
        // Predicated region
        $region61: #{forward.1} parent=47 // pred_check
          %p1734 = pneg %p226
        $region62: #{forward.1} parent=47 // pred_check_branch
          %1736 = sbr.rel (%p1734) target = $region64
        $region63: #{forward.1} parent=47 // pred_region
          _
        $region64: #{forward.1} parent=47 // pred_fallthru
          _
        // Predicated region
        $region65: #{forward.1} parent=47 // pred_check
          %p1737 = pneg %p252
        $region66: #{forward.1} parent=47 // pred_check_branch
          %1739 = sbr.rel (%p1737) target = $region68
        $region67: #{forward.1} parent=47 // pred_region
          _
        $region68: #{forward.1} parent=47 // pred_fallthru
          _
      $region48: #{forward.1} parent=5 // pred_fallthru
        _
      %p1740 = scmp.le.s32.totalorder 2, %s21
      // Predicated region
      $region69: #{forward.1} parent=5 // pred_check
        %p1741 = pneg %p1740
      $region70: #{forward.1} parent=5 // pred_check_branch
        %1743 = sbr.rel (%p1741) target = $region72
      $region71: #{forward.1} parent=5 // pred_region
        %s1744 = ssub.s32 %s21, 2
        // Predicated region
        $region73: #{forward.1} parent=71 // pred_check
          %p1745 = pneg %p232
        $region74: #{forward.1} parent=71 // pred_check_branch
          %1747 = sbr.rel (%p1745) target = $region76
        $region75: #{forward.1} parent=71 // pred_region
          %p1748 = scmp.lt.s32.totalorder %s27, 1
          %s1749 = scalar_select %p1748, %s27, 1
          %s1750 = smul.addr %s1749, 3
          %s1751 = smul.addr %s1750, 8
          %s1752 = scalar_lea.vmem %s7, %s1751
        $region76: #{forward.1} parent=71 // pred_fallthru
          _
        // Predicated region
        $region77: #{forward.1} parent=71 // pred_check
          %p1753 = pneg %p258
        $region78: #{forward.1} parent=71 // pred_check_branch
          %1755 = sbr.rel (%p1753) target = $region80
        $region79: #{forward.1} parent=71 // pred_region
          %p1756 = scmp.lt.s32.totalorder %s27, 1
          %s1757 = scalar_select %p1756, %s27, 1
          %s1758 = smul.addr %s1757, 3
          %s1759 = smul.addr %s1758, 8
          %s1760 = scalar_lea.vmem %s8, %s1759
        $region80: #{forward.1} parent=71 // pred_fallthru
          _
      $region72: #{forward.1} parent=5 // pred_fallthru
        _
    $region6: #{forward.1} parent=1 // loop_footer
      %s25 = sadd.s32 1, %s21
    $region7: #{forward.1} parent=1 // loop_footer_branch
      %20 = sbr.rel target = $region3
    $region8: #{forward.1} parent=1 // loop_exit
      _
    %1761 = vsyncpa [#allocation3], 1
    %s1762 = scalar_lea.sflag [#allocation3], 1
    %1763 = vsyncpa %s1762, 1
    %1764 = vsyncpa [#allocation5], 1
    %s1765 = scalar_lea.sflag [#allocation5], 1
    %1766 = vsyncpa %s1765, 1

</llo_original>
